<compile_context>
chip_gen: v7x
topology: tpu7x:2x2x1
jax: 0.10.0
libtpu: 0.0.40
codegen_flags: <defaults>
</compile_context>

<pallas_src>
import functools
import math

import jax
import jax.numpy as jnp
from jax.experimental import pallas as pl
from jax.experimental.pallas import tpu as pltpu


# ----------------------------- Pallas kernel ------------------------------ #
def _mha_kernel(q_ref, k_ref, v_ref,
                wq_ref, bq_ref, wk_ref, bk_ref, wv_ref, bv_ref,
                wo_ref, bo_ref, gamma_ref, beta_ref,
                out_ref, o_scratch,
                *, h, d_k, d_v, eps):
    f32 = jnp.float32
    q_x = q_ref[0]                      # (tq, d_model)
    k_x = k_ref[0]                      # (nk, d_model)
    v_x = v_ref[0]                      # (nk, d_model)
    cdt = q_x.dtype                     # dtype fed to the MXU (bf16 stays bf16)

    # Full-width projections: one lane-dense MXU matmul each (N = h*d_k, h*d_v).
    # Wq/bq are pre-scaled by 1/sqrt(d_k) on the host.
    q = (jnp.dot(q_x, wq_ref[...], preferred_element_type=f32)
         + bq_ref[...]).astype(cdt)                               # (tq, h*d_k)
    k = (jnp.dot(k_x, wk_ref[...], preferred_element_type=f32)
         + bk_ref[...]).astype(cdt)                               # (nk, h*d_k)
    v = (jnp.dot(v_x, wv_ref[...], preferred_element_type=f32)
         + bv_ref[...]).astype(cdt)                               # (nk, h*d_v)

    # Per-head attention: heads are static lane slices of the fused projections.
    for i in range(h):
        qi = q[:, i * d_k:(i + 1) * d_k]                          # (tq, d_k)
        ki = k[:, i * d_k:(i + 1) * d_k]                          # (nk, d_k)
        vi = v[:, i * d_v:(i + 1) * d_v]                          # (nk, d_v)
        # scores = qi @ ki.T  (scale already folded into Wq)
        s = jax.lax.dot_general(qi, ki, (((1,), (1,)), ((), ())),
                                preferred_element_type=f32)       # (tq, nk)
        s = s - jnp.max(s, axis=-1, keepdims=True)
        p = jnp.exp(s)                                            # unnormalized
        denom = jnp.sum(p, axis=-1, keepdims=True)                # (tq, 1)
        oi = jnp.dot(p.astype(cdt), vi, preferred_element_type=f32)
        oi = oi * pl.reciprocal(denom, approx=True)               # (tq, d_v)
        o_scratch[:, i * d_v:(i + 1) * d_v] = oi.astype(o_scratch.dtype)

    # Fused output projection: one (tq, h*d_v) @ (h*d_v, d_model) matmul.
    attn_out = (jnp.dot(o_scratch[...], wo_ref[...],
                        preferred_element_type=f32) + bo_ref[...])  # (tq, d_model)

    # Residual + LayerNorm (dropout == identity in eval mode).
    x = q_x.astype(f32) + attn_out
    mean = jnp.mean(x, axis=-1, keepdims=True)
    xc = x - mean
    var = jnp.mean(xc * xc, axis=-1, keepdims=True)
    y = xc * jax.lax.rsqrt(var + eps)
    out_ref[0] = (y * gamma_ref[...] + beta_ref[...]).astype(out_ref.dtype)


# ------------------------------- Wrapper ---------------------------------- #
def prepare_params(params, d_k):
    """One-time host-side re-layout: transpose Linear weights to (in, out) and
    fold the 1/sqrt(d_k) attention scale into the query projection."""
    scale = 1.0 / math.sqrt(d_k)
    return {
        'wq_t': params['wq'].T * scale,          # (d_model, h*d_k), pre-scaled
        'bq': (params['bq'] * scale)[None, :],   # (1, h*d_k)
        'wk_t': params['wk'].T,                  # (d_model, h*d_k)
        'bk': params['bk'][None, :],
        'wv_t': params['wv'].T,                  # (d_model, h*d_v)
        'bv': params['bv'][None, :],
        'wo_t': params['wo'].T,                  # (h*d_v, d_model)
        'bo': params['bo'][None, :],
        'gamma': params['gamma'][None, :],
        'beta': params['beta'][None, :],
    }


def multi_head_attention(queries, keys, values, kparams, *, h, d_k, d_v,
                         eps=1e-5, block_q=256):
    b_s, nq, d_model = queries.shape
    nk = keys.shape[1]

    # Query-tile size: multiple of 8 (sublane) or the full extent.
    tq = min(block_q, nq)
    if tq != nq and tq % 8 != 0:
        tq = max(8, (tq // 8) * 8)
    n_q_tiles = pl.cdiv(nq, tq)

    q_spec = pl.BlockSpec((1, tq, d_model), lambda b, qi: (b, qi, 0))
    kv_spec = pl.BlockSpec((1, nk, d_model), lambda b, qi: (b, 0, 0))

    def const_spec(shape):
        # Grid-invariant operand: constant index map => single-buffer it.
        return pl.BlockSpec(shape, lambda b, qi: (0, 0),
                            pipeline_mode=pl.Buffered(1))

    kernel = functools.partial(_mha_kernel, h=h, d_k=d_k, d_v=d_v, eps=eps)

    return pl.pallas_call(
        kernel,
        out_shape=jax.ShapeDtypeStruct((b_s, nq, d_model), queries.dtype),
        grid=(b_s, n_q_tiles),
        in_specs=[
            q_spec,
            kv_spec,
            kv_spec,
            const_spec(kparams['wq_t'].shape), const_spec(kparams['bq'].shape),
            const_spec(kparams['wk_t'].shape), const_spec(kparams['bk'].shape),
            const_spec(kparams['wv_t'].shape), const_spec(kparams['bv'].shape),
            const_spec(kparams['wo_t'].shape), const_spec(kparams['bo'].shape),
            const_spec(kparams['gamma'].shape), const_spec(kparams['beta'].shape),
        ],
        out_specs=q_spec,
        scratch_shapes=[pltpu.VMEM((tq, h * d_v), queries.dtype)],
        compiler_params=pltpu.CompilerParams(
            dimension_semantics=("parallel", "parallel")),
    )(queries, keys, values,
      kparams['wq_t'], kparams['bq'], kparams['wk_t'], kparams['bk'],
      kparams['wv_t'], kparams['bv'], kparams['wo_t'], kparams['bo'],
      kparams['gamma'], kparams['beta'])


# ----------------------- Parameter init (deterministic) -------------------- #
def xavier_uniform(key, shape):
    fan_out, fan_in = shape  # PyTorch Linear weight: (out_features, in_features)
    limit = math.sqrt(6.0 / (fan_in + fan_out))
    return jax.random.uniform(key, shape, jnp.float32, -limit, limit)


def init_params(key, d_model, d_k, d_v, h):
    ks = jax.random.split(key, 4)
    return {
        'wq': xavier_uniform(ks[0], (h * d_k, d_model)),
        'bq': jnp.zeros((h * d_k,), jnp.float32),
        'wk': xavier_uniform(ks[1], (h * d_k, d_model)),
        'bk': jnp.zeros((h * d_k,), jnp.float32),
        'wv': xavier_uniform(ks[2], (h * d_v, d_model)),
        'bv': jnp.zeros((h * d_v,), jnp.float32),
        'wo': xavier_uniform(ks[3], (d_model, h * d_v)),
        'bo': jnp.zeros((d_model,), jnp.float32),
        'gamma': jnp.ones((d_model,), jnp.float32),
        'beta': jnp.zeros((d_model,), jnp.float32),
    }


# --------------------------- Pure-JAX reference ---------------------------- #
def ref_forward(q_in, k_in, v_in, p, h, d_k, d_v, eps=1e-5):
    b_s, nq, d_model = q_in.shape
    nk = k_in.shape[1]
    q = (q_in @ p['wq'].T + p['bq']).reshape(b_s, nq, h, d_k).transpose(0, 2, 1, 3)
    k = (k_in @ p['wk'].T + p['bk']).reshape(b_s, nk, h, d_k).transpose(0, 2, 3, 1)
    v = (v_in @ p['wv'].T + p['bv']).reshape(b_s, nk, h, d_v).transpose(0, 2, 1, 3)
    att = jax.nn.softmax(jnp.matmul(q, k) / math.sqrt(d_k), axis=-1)
    out = jnp.matmul(att, v).transpose(0, 2, 1, 3).reshape(b_s, nq, h * d_v)
    out = out @ p['wo'].T + p['bo']
    x = q_in + out
    mean = x.mean(-1, keepdims=True)
    var = ((x - mean) ** 2).mean(-1, keepdims=True)
    return (x - mean) / jnp.sqrt(var + eps) * p['gamma'] + p['beta']


if __name__ == "__main__":
    b_s, seq, d_model, h = 2, 16, 32, 4
    d_k = d_v = d_model // h

    key = jax.random.PRNGKey(0)
    kq, kk, kv, kp = jax.random.split(key, 4)
    queries = jax.random.normal(kq, (b_s, seq, d_model), jnp.float32)
    keys = jax.random.normal(kk, (b_s, seq, d_model), jnp.float32)
    values = jax.random.normal(kv, (b_s, seq, d_model), jnp.float32)
    params = init_params(kp, d_model, d_k, d_v, h)
    kparams = prepare_params(params, d_k)   # one-time, outside the call path

    # block_q=8 -> grid (b_s=2, nq/8=2): exercises the query-tile axis.
    out = multi_head_attention(queries, keys, values, kparams,
                               h=h, d_k=d_k, d_v=d_v, block_q=8)
    out = jax.block_until_ready(out)

    ref = ref_forward(queries, keys, values, params, h, d_k, d_v)
    assert out.shape == (b_s, seq, d_model)
    # approx reciprocal (EUP) => slightly looser tolerance than an exact divide.
    assert jnp.allclose(out, ref, atol=2e-3, rtol=2e-3), "mismatch vs JAX reference"
    print("KERNEL_OK")
</pallas_src>

<mosaic_0001>
module attributes {stable_mosaic.version = 11 : i64} {
  func.func @_mha_kernel(%arg0: i32, %arg1: i32, %arg2: memref<1x8x32xf32, #tpu.memory_space<vmem>>, %arg3: memref<1x16x32xf32, #tpu.memory_space<vmem>>, %arg4: memref<1x16x32xf32, #tpu.memory_space<vmem>>, %arg5: memref<32x32xf32, #tpu.memory_space<vmem>>, %arg6: memref<1x32xf32, #tpu.memory_space<vmem>>, %arg7: memref<32x32xf32, #tpu.memory_space<vmem>>, %arg8: memref<1x32xf32, #tpu.memory_space<vmem>>, %arg9: memref<32x32xf32, #tpu.memory_space<vmem>>, %arg10: memref<1x32xf32, #tpu.memory_space<vmem>>, %arg11: memref<32x32xf32, #tpu.memory_space<vmem>>, %arg12: memref<1x32xf32, #tpu.memory_space<vmem>>, %arg13: memref<1x32xf32, #tpu.memory_space<vmem>>, %arg14: memref<1x32xf32, #tpu.memory_space<vmem>>, %arg15: memref<1x8x32xf32, #tpu.memory_space<vmem>>, %arg16: memref<8x32xf32, #tpu.memory_space<vmem>>) attributes {dimension_semantics = [#tpu.dimension_semantics<parallel>, #tpu.dimension_semantics<parallel>], iteration_bounds = array<i64: 2, 2>, scalar_prefetch = 0 : i64, scratch_operands = 1 : i64, tpu.core_type = #tpu.core_type<tc>, window_params = [{transform_indices = @transform_0, window_bounds = array<i64: 1, 8, 32>}, {transform_indices = @transform_1, window_bounds = array<i64: 1, 16, 32>}, {transform_indices = @transform_2, window_bounds = array<i64: 1, 16, 32>}, {pipeline_mode = #tpu.pipeline_mode<synchronous>, transform_indices = @transform_3, window_bounds = array<i64: 32, 32>}, {pipeline_mode = #tpu.pipeline_mode<synchronous>, transform_indices = @transform_4, window_bounds = array<i64: 1, 32>}, {pipeline_mode = #tpu.pipeline_mode<synchronous>, transform_indices = @transform_5, window_bounds = array<i64: 32, 32>}, {pipeline_mode = #tpu.pipeline_mode<synchronous>, transform_indices = @transform_6, window_bounds = array<i64: 1, 32>}, {pipeline_mode = #tpu.pipeline_mode<synchronous>, transform_indices = @transform_7, window_bounds = array<i64: 32, 32>}, {pipeline_mode = #tpu.pipeline_mode<synchronous>, transform_indices = @transform_8, window_bounds = array<i64: 1, 32>}, {pipeline_mode = #tpu.pipeline_mode<synchronous>, transform_indices = @transform_9, window_bounds = array<i64: 32, 32>}, {pipeline_mode = #tpu.pipeline_mode<synchronous>, transform_indices = @transform_10, window_bounds = array<i64: 1, 32>}, {pipeline_mode = #tpu.pipeline_mode<synchronous>, transform_indices = @transform_11, window_bounds = array<i64: 1, 32>}, {pipeline_mode = #tpu.pipeline_mode<synchronous>, transform_indices = @transform_12, window_bounds = array<i64: 1, 32>}, {transform_indices = @transform_13, window_bounds = array<i64: 1, 8, 32>}]} {
    %c0 = arith.constant 0 : index
    %c0_0 = arith.constant 0 : index
    %c0_1 = arith.constant 0 : index
    %0 = vector.load %arg2[%c0, %c0_0, %c0_1] : memref<1x8x32xf32, #tpu.memory_space<vmem>>, vector<1x8x32xf32>
    %1 = vector.shape_cast %0 : vector<1x8x32xf32> to vector<8x32xf32>
    %c0_2 = arith.constant 0 : index
    %c0_3 = arith.constant 0 : index
    %c0_4 = arith.constant 0 : index
    %2 = vector.load %arg3[%c0_2, %c0_3, %c0_4] : memref<1x16x32xf32, #tpu.memory_space<vmem>>, vector<1x16x32xf32>
    %3 = vector.shape_cast %2 : vector<1x16x32xf32> to vector<16x32xf32>
    %c0_5 = arith.constant 0 : index
    %c0_6 = arith.constant 0 : index
    %c0_7 = arith.constant 0 : index
    %4 = vector.load %arg4[%c0_5, %c0_6, %c0_7] : memref<1x16x32xf32, #tpu.memory_space<vmem>>, vector<1x16x32xf32>
    %5 = vector.shape_cast %4 : vector<1x16x32xf32> to vector<16x32xf32>
    %c0_8 = arith.constant 0 : index
    %c0_9 = arith.constant 0 : index
    %6 = vector.load %arg5[%c0_8, %c0_9] : memref<32x32xf32, #tpu.memory_space<vmem>>, vector<32x32xf32>
    %cst = arith.constant dense<0.000000e+00> : vector<8x32xf32>
    %7 = tpu.matmul %1, %6, %cst {dimension_numbers = #tpu.dot_dimension_numbers<[1], [0], [0], [1], [0, 0, 1, 1], [], []>} : vector<8x32xf32>, vector<32x32xf32>, vector<8x32xf32> -> vector<8x32xf32>
    %c0_10 = arith.constant 0 : index
    %c0_11 = arith.constant 0 : index
    %8 = vector.load %arg6[%c0_10, %c0_11] : memref<1x32xf32, #tpu.memory_space<vmem>>, vector<1x32xf32>
    %9 = vector.broadcast %8 : vector<1x32xf32> to vector<8x32xf32>
    %10 = arith.addf %7, %9 : vector<8x32xf32>
    %c0_12 = arith.constant 0 : index
    %c0_13 = arith.constant 0 : index
    %11 = vector.load %arg7[%c0_12, %c0_13] : memref<32x32xf32, #tpu.memory_space<vmem>>, vector<32x32xf32>
    %cst_14 = arith.constant dense<0.000000e+00> : vector<16x32xf32>
    %12 = tpu.matmul %3, %11, %cst_14 {dimension_numbers = #tpu.dot_dimension_numbers<[1], [0], [0], [1], [0, 0, 1, 1], [], []>} : vector<16x32xf32>, vector<32x32xf32>, vector<16x32xf32> -> vector<16x32xf32>
    %c0_15 = arith.constant 0 : index
    %c0_16 = arith.constant 0 : index
    %13 = vector.load %arg8[%c0_15, %c0_16] : memref<1x32xf32, #tpu.memory_space<vmem>>, vector<1x32xf32>
    %14 = vector.broadcast %13 : vector<1x32xf32> to vector<16x32xf32>
    %15 = arith.addf %12, %14 : vector<16x32xf32>
    %c0_17 = arith.constant 0 : index
    %c0_18 = arith.constant 0 : index
    %16 = vector.load %arg9[%c0_17, %c0_18] : memref<32x32xf32, #tpu.memory_space<vmem>>, vector<32x32xf32>
    %cst_19 = arith.constant dense<0.000000e+00> : vector<16x32xf32>
    %17 = tpu.matmul %5, %16, %cst_19 {dimension_numbers = #tpu.dot_dimension_numbers<[1], [0], [0], [1], [0, 0, 1, 1], [], []>} : vector<16x32xf32>, vector<32x32xf32>, vector<16x32xf32> -> vector<16x32xf32>
    %c0_20 = arith.constant 0 : index
    %c0_21 = arith.constant 0 : index
    %18 = vector.load %arg10[%c0_20, %c0_21] : memref<1x32xf32, #tpu.memory_space<vmem>>, vector<1x32xf32>
    %19 = vector.broadcast %18 : vector<1x32xf32> to vector<16x32xf32>
    %20 = arith.addf %17, %19 : vector<16x32xf32>
    %21 = vector.extract_strided_slice %10 {offsets = [0, 0], sizes = [8, 8], strides = [1, 1]} : vector<8x32xf32> to vector<8x8xf32>
    %22 = vector.extract_strided_slice %15 {offsets = [0, 0], sizes = [16, 8], strides = [1, 1]} : vector<16x32xf32> to vector<16x8xf32>
    %23 = vector.extract_strided_slice %20 {offsets = [0, 0], sizes = [16, 8], strides = [1, 1]} : vector<16x32xf32> to vector<16x8xf32>
    %cst_22 = arith.constant dense<0.000000e+00> : vector<8x16xf32>
    %24 = tpu.matmul %21, %22, %cst_22 {dimension_numbers = #tpu.dot_dimension_numbers<[1], [1], [0], [0], [0, 0, 1, 0], [], []>} : vector<8x8xf32>, vector<16x8xf32>, vector<8x16xf32> -> vector<8x16xf32>
    %cst_23 = arith.constant dense<0xFF800000> : vector<8xf32>
    %25 = vector.multi_reduction <maximumf>, %24, %cst_23 [1] : vector<8x16xf32> to vector<8xf32>
    %26 = vector.shape_cast %25 : vector<8xf32> to vector<8x1xf32>
    %27 = vector.broadcast %26 : vector<8x1xf32> to vector<8x16xf32>
    %28 = arith.subf %24, %27 : vector<8x16xf32>
    %29 = math.exp %28 : vector<8x16xf32>
    %cst_24 = arith.constant dense<0.000000e+00> : vector<8xf32>
    %30 = vector.multi_reduction <add>, %29, %cst_24 [1] : vector<8x16xf32> to vector<8xf32>
    %31 = vector.shape_cast %30 : vector<8xf32> to vector<8x1xf32>
    %cst_25 = arith.constant dense<0.000000e+00> : vector<8x8xf32>
    %32 = tpu.matmul %29, %23, %cst_25 {dimension_numbers = #tpu.dot_dimension_numbers<[1], [0], [0], [1], [0, 0, 1, 1], [], []>} : vector<8x16xf32>, vector<16x8xf32>, vector<8x8xf32> -> vector<8x8xf32>
    %33 = tpu.reciprocal %31 {approx = true} : vector<8x1xf32> -> vector<8x1xf32>
    %34 = vector.broadcast %33 : vector<8x1xf32> to vector<8x8xf32>
    %35 = arith.mulf %32, %34 : vector<8x8xf32>
    %c0_26 = arith.constant 0 : index
    %c0_27 = arith.constant 0 : index
    %36 = vector.load %arg16[%c0_26, %c0_27] : memref<8x32xf32, #tpu.memory_space<vmem>>, vector<8x8xf32>
    tpu.vector_store %arg16[%c0_26, %c0_27], %35 {strides = array<i32>} : memref<8x32xf32, #tpu.memory_space<vmem>>, vector<8x8xf32>,
    %37 = vector.extract_strided_slice %10 {offsets = [0, 8], sizes = [8, 8], strides = [1, 1]} : vector<8x32xf32> to vector<8x8xf32>
    %38 = vector.extract_strided_slice %15 {offsets = [0, 8], sizes = [16, 8], strides = [1, 1]} : vector<16x32xf32> to vector<16x8xf32>
    %39 = vector.extract_strided_slice %20 {offsets = [0, 8], sizes = [16, 8], strides = [1, 1]} : vector<16x32xf32> to vector<16x8xf32>
    %cst_28 = arith.constant dense<0.000000e+00> : vector<8x16xf32>
    %40 = tpu.matmul %37, %38, %cst_28 {dimension_numbers = #tpu.dot_dimension_numbers<[1], [1], [0], [0], [0, 0, 1, 0], [], []>} : vector<8x8xf32>, vector<16x8xf32>, vector<8x16xf32> -> vector<8x16xf32>
    %cst_29 = arith.constant dense<0xFF800000> : vector<8xf32>
    %41 = vector.multi_reduction <maximumf>, %40, %cst_29 [1] : vector<8x16xf32> to vector<8xf32>
    %42 = vector.shape_cast %41 : vector<8xf32> to vector<8x1xf32>
    %43 = vector.broadcast %42 : vector<8x1xf32> to vector<8x16xf32>
    %44 = arith.subf %40, %43 : vector<8x16xf32>
    %45 = math.exp %44 : vector<8x16xf32>
    %cst_30 = arith.constant dense<0.000000e+00> : vector<8xf32>
    %46 = vector.multi_reduction <add>, %45, %cst_30 [1] : vector<8x16xf32> to vector<8xf32>
    %47 = vector.shape_cast %46 : vector<8xf32> to vector<8x1xf32>
    %cst_31 = arith.constant dense<0.000000e+00> : vector<8x8xf32>
    %48 = tpu.matmul %45, %39, %cst_31 {dimension_numbers = #tpu.dot_dimension_numbers<[1], [0], [0], [1], [0, 0, 1, 1], [], []>} : vector<8x16xf32>, vector<16x8xf32>, vector<8x8xf32> -> vector<8x8xf32>
    %49 = tpu.reciprocal %47 {approx = true} : vector<8x1xf32> -> vector<8x1xf32>
    %50 = vector.broadcast %49 : vector<8x1xf32> to vector<8x8xf32>
    %51 = arith.mulf %48, %50 : vector<8x8xf32>
    %c0_32 = arith.constant 0 : index
    %c8 = arith.constant 8 : index
    %52 = vector.load %arg16[%c0_32, %c8] : memref<8x32xf32, #tpu.memory_space<vmem>>, vector<8x8xf32>
    tpu.vector_store %arg16[%c0_32, %c8], %51 {strides = array<i32>} : memref<8x32xf32, #tpu.memory_space<vmem>>, vector<8x8xf32>,
    %53 = vector.extract_strided_slice %10 {offsets = [0, 16], sizes = [8, 8], strides = [1, 1]} : vector<8x32xf32> to vector<8x8xf32>
    %54 = vector.extract_strided_slice %15 {offsets = [0, 16], sizes = [16, 8], strides = [1, 1]} : vector<16x32xf32> to vector<16x8xf32>
    %55 = vector.extract_strided_slice %20 {offsets = [0, 16], sizes = [16, 8], strides = [1, 1]} : vector<16x32xf32> to vector<16x8xf32>
    %cst_33 = arith.constant dense<0.000000e+00> : vector<8x16xf32>
    %56 = tpu.matmul %53, %54, %cst_33 {dimension_numbers = #tpu.dot_dimension_numbers<[1], [1], [0], [0], [0, 0, 1, 0], [], []>} : vector<8x8xf32>, vector<16x8xf32>, vector<8x16xf32> -> vector<8x16xf32>
    %cst_34 = arith.constant dense<0xFF800000> : vector<8xf32>
    %57 = vector.multi_reduction <maximumf>, %56, %cst_34 [1] : vector<8x16xf32> to vector<8xf32>
    %58 = vector.shape_cast %57 : vector<8xf32> to vector<8x1xf32>
    %59 = vector.broadcast %58 : vector<8x1xf32> to vector<8x16xf32>
    %60 = arith.subf %56, %59 : vector<8x16xf32>
    %61 = math.exp %60 : vector<8x16xf32>
    %cst_35 = arith.constant dense<0.000000e+00> : vector<8xf32>
    %62 = vector.multi_reduction <add>, %61, %cst_35 [1] : vector<8x16xf32> to vector<8xf32>
    %63 = vector.shape_cast %62 : vector<8xf32> to vector<8x1xf32>
    %cst_36 = arith.constant dense<0.000000e+00> : vector<8x8xf32>
    %64 = tpu.matmul %61, %55, %cst_36 {dimension_numbers = #tpu.dot_dimension_numbers<[1], [0], [0], [1], [0, 0, 1, 1], [], []>} : vector<8x16xf32>, vector<16x8xf32>, vector<8x8xf32> -> vector<8x8xf32>
    %65 = tpu.reciprocal %63 {approx = true} : vector<8x1xf32> -> vector<8x1xf32>
    %66 = vector.broadcast %65 : vector<8x1xf32> to vector<8x8xf32>
    %67 = arith.mulf %64, %66 : vector<8x8xf32>
    %c0_37 = arith.constant 0 : index
    %c16 = arith.constant 16 : index
    %68 = vector.load %arg16[%c0_37, %c16] : memref<8x32xf32, #tpu.memory_space<vmem>>, vector<8x8xf32>
    tpu.vector_store %arg16[%c0_37, %c16], %67 {strides = array<i32>} : memref<8x32xf32, #tpu.memory_space<vmem>>, vector<8x8xf32>,
    %69 = vector.extract_strided_slice %10 {offsets = [0, 24], sizes = [8, 8], strides = [1, 1]} : vector<8x32xf32> to vector<8x8xf32>
    %70 = vector.extract_strided_slice %15 {offsets = [0, 24], sizes = [16, 8], strides = [1, 1]} : vector<16x32xf32> to vector<16x8xf32>
    %71 = vector.extract_strided_slice %20 {offsets = [0, 24], sizes = [16, 8], strides = [1, 1]} : vector<16x32xf32> to vector<16x8xf32>
    %cst_38 = arith.constant dense<0.000000e+00> : vector<8x16xf32>
    %72 = tpu.matmul %69, %70, %cst_38 {dimension_numbers = #tpu.dot_dimension_numbers<[1], [1], [0], [0], [0, 0, 1, 0], [], []>} : vector<8x8xf32>, vector<16x8xf32>, vector<8x16xf32> -> vector<8x16xf32>
    %cst_39 = arith.constant dense<0xFF800000> : vector<8xf32>
    %73 = vector.multi_reduction <maximumf>, %72, %cst_39 [1] : vector<8x16xf32> to vector<8xf32>
    %74 = vector.shape_cast %73 : vector<8xf32> to vector<8x1xf32>
    %75 = vector.broadcast %74 : vector<8x1xf32> to vector<8x16xf32>
    %76 = arith.subf %72, %75 : vector<8x16xf32>
    %77 = math.exp %76 : vector<8x16xf32>
    %cst_40 = arith.constant dense<0.000000e+00> : vector<8xf32>
    %78 = vector.multi_reduction <add>, %77, %cst_40 [1] : vector<8x16xf32> to vector<8xf32>
    %79 = vector.shape_cast %78 : vector<8xf32> to vector<8x1xf32>
    %cst_41 = arith.constant dense<0.000000e+00> : vector<8x8xf32>
    %80 = tpu.matmul %77, %71, %cst_41 {dimension_numbers = #tpu.dot_dimension_numbers<[1], [0], [0], [1], [0, 0, 1, 1], [], []>} : vector<8x16xf32>, vector<16x8xf32>, vector<8x8xf32> -> vector<8x8xf32>
    %81 = tpu.reciprocal %79 {approx = true} : vector<8x1xf32> -> vector<8x1xf32>
    %82 = vector.broadcast %81 : vector<8x1xf32> to vector<8x8xf32>
    %83 = arith.mulf %80, %82 : vector<8x8xf32>
    %c0_42 = arith.constant 0 : index
    %c24 = arith.constant 24 : index
    %84 = vector.load %arg16[%c0_42, %c24] : memref<8x32xf32, #tpu.memory_space<vmem>>, vector<8x8xf32>
    tpu.vector_store %arg16[%c0_42, %c24], %83 {strides = array<i32>} : memref<8x32xf32, #tpu.memory_space<vmem>>, vector<8x8xf32>,
    %c0_43 = arith.constant 0 : index
    %c0_44 = arith.constant 0 : index
    %85 = vector.load %arg16[%c0_43, %c0_44] : memref<8x32xf32, #tpu.memory_space<vmem>>, vector<8x32xf32>
    %c0_45 = arith.constant 0 : index
    %c0_46 = arith.constant 0 : index
    %86 = vector.load %arg11[%c0_45, %c0_46] : memref<32x32xf32, #tpu.memory_space<vmem>>, vector<32x32xf32>
    %cst_47 = arith.constant dense<0.000000e+00> : vector<8x32xf32>
    %87 = tpu.matmul %85, %86, %cst_47 {dimension_numbers = #tpu.dot_dimension_numbers<[1], [0], [0], [1], [0, 0, 1, 1], [], []>} : vector<8x32xf32>, vector<32x32xf32>, vector<8x32xf32> -> vector<8x32xf32>
    %c0_48 = arith.constant 0 : index
    %c0_49 = arith.constant 0 : index
    %88 = vector.load %arg12[%c0_48, %c0_49] : memref<1x32xf32, #tpu.memory_space<vmem>>, vector<1x32xf32>
    %89 = vector.broadcast %88 : vector<1x32xf32> to vector<8x32xf32>
    %90 = arith.addf %87, %89 : vector<8x32xf32>
    %91 = arith.addf %1, %90 : vector<8x32xf32>
    %cst_50 = arith.constant dense<0.000000e+00> : vector<8xf32>
    %92 = vector.multi_reduction <add>, %91, %cst_50 [1] : vector<8x32xf32> to vector<8xf32>
    %93 = vector.shape_cast %92 : vector<8xf32> to vector<8x1xf32>
    %cst_51 = arith.constant 3.200000e+01 : f32
    %94 = vector.broadcast %cst_51 : f32 to vector<8x1xf32>
    %95 = arith.divf %93, %94 : vector<8x1xf32>
    %96 = vector.broadcast %95 : vector<8x1xf32> to vector<8x32xf32>
    %97 = arith.subf %91, %96 : vector<8x32xf32>
    %98 = arith.mulf %97, %97 : vector<8x32xf32>
    %cst_52 = arith.constant dense<0.000000e+00> : vector<8xf32>
    %99 = vector.multi_reduction <add>, %98, %cst_52 [1] : vector<8x32xf32> to vector<8xf32>
    %100 = vector.shape_cast %99 : vector<8xf32> to vector<8x1xf32>
    %cst_53 = arith.constant 3.200000e+01 : f32
    %101 = vector.broadcast %cst_53 : f32 to vector<8x1xf32>
    %102 = arith.divf %100, %101 : vector<8x1xf32>
    %cst_54 = arith.constant 9.99999974E-6 : f32
    %103 = vector.broadcast %cst_54 : f32 to vector<8x1xf32>
    %104 = arith.addf %102, %103 : vector<8x1xf32>
    %105 = math.rsqrt %104 : vector<8x1xf32>
    %106 = vector.broadcast %105 : vector<8x1xf32> to vector<8x32xf32>
    %107 = arith.mulf %97, %106 : vector<8x32xf32>
    %c0_55 = arith.constant 0 : index
    %c0_56 = arith.constant 0 : index
    %108 = vector.load %arg13[%c0_55, %c0_56] : memref<1x32xf32, #tpu.memory_space<vmem>>, vector<1x32xf32>
    %109 = vector.broadcast %108 : vector<1x32xf32> to vector<8x32xf32>
    %110 = arith.mulf %107, %109 : vector<8x32xf32>
    %c0_57 = arith.constant 0 : index
    %c0_58 = arith.constant 0 : index
    %111 = vector.load %arg14[%c0_57, %c0_58] : memref<1x32xf32, #tpu.memory_space<vmem>>, vector<1x32xf32>
    %112 = vector.broadcast %111 : vector<1x32xf32> to vector<8x32xf32>
    %113 = arith.addf %110, %112 : vector<8x32xf32>
    %c0_59 = arith.constant 0 : index
    %c0_60 = arith.constant 0 : index
    %c0_61 = arith.constant 0 : index
    %114 = vector.load %arg15[%c0_59, %c0_60, %c0_61] : memref<1x8x32xf32, #tpu.memory_space<vmem>>, vector<1x8x32xf32>
    %115 = vector.shape_cast %114 : vector<1x8x32xf32> to vector<8x32xf32>
    %116 = vector.shape_cast %113 : vector<8x32xf32> to vector<1x8x32xf32>
    tpu.vector_store %arg15[%c0_59, %c0_60, %c0_61], %116 {strides = array<i32>} : memref<1x8x32xf32, #tpu.memory_space<vmem>>, vector<1x8x32xf32>,
    return
  }
  func.func @transform_0(%arg0: i32, %arg1: i32) -> (i32, i32, i32) {
    %c0_i32 = arith.constant 0 : i32
    %c0_i32_0 = arith.constant 0 : i32
    return %arg0, %arg1, %c0_i32 : i32, i32, i32
  }
  func.func @transform_1(%arg0: i32, %arg1: i32) -> (i32, i32, i32) {
    %c0_i32 = arith.constant 0 : i32
    %c0_i32_0 = arith.constant 0 : i32
    %c0_i32_1 = arith.constant 0 : i32
    return %arg0, %c0_i32, %c0_i32_0 : i32, i32, i32
  }
  func.func @transform_2(%arg0: i32, %arg1: i32) -> (i32, i32, i32) {
    %c0_i32 = arith.constant 0 : i32
    %c0_i32_0 = arith.constant 0 : i32
    %c0_i32_1 = arith.constant 0 : i32
    return %arg0, %c0_i32, %c0_i32_0 : i32, i32, i32
  }
  func.func @transform_3(%arg0: i32, %arg1: i32) -> (i32, i32) {
    %c0_i32 = arith.constant 0 : i32
    %c0_i32_0 = arith.constant 0 : i32
    %c0_i32_1 = arith.constant 0 : i32
    return %c0_i32, %c0_i32_0 : i32, i32
  }
  func.func @transform_4(%arg0: i32, %arg1: i32) -> (i32, i32) {
    %c0_i32 = arith.constant 0 : i32
    %c0_i32_0 = arith.constant 0 : i32
    %c0_i32_1 = arith.constant 0 : i32
    return %c0_i32, %c0_i32_0 : i32, i32
  }
  func.func @transform_5(%arg0: i32, %arg1: i32) -> (i32, i32) {
    %c0_i32 = arith.constant 0 : i32
    %c0_i32_0 = arith.constant 0 : i32
    %c0_i32_1 = arith.constant 0 : i32
    return %c0_i32, %c0_i32_0 : i32, i32
  }
  func.func @transform_6(%arg0: i32, %arg1: i32) -> (i32, i32) {
    %c0_i32 = arith.constant 0 : i32
    %c0_i32_0 = arith.constant 0 : i32
    %c0_i32_1 = arith.constant 0 : i32
    return %c0_i32, %c0_i32_0 : i32, i32
  }
  func.func @transform_7(%arg0: i32, %arg1: i32) -> (i32, i32) {
    %c0_i32 = arith.constant 0 : i32
    %c0_i32_0 = arith.constant 0 : i32
    %c0_i32_1 = arith.constant 0 : i32
    return %c0_i32, %c0_i32_0 : i32, i32
  }
  func.func @transform_8(%arg0: i32, %arg1: i32) -> (i32, i32) {
    %c0_i32 = arith.constant 0 : i32
    %c0_i32_0 = arith.constant 0 : i32
    %c0_i32_1 = arith.constant 0 : i32
    return %c0_i32, %c0_i32_0 : i32, i32
  }
  func.func @transform_9(%arg0: i32, %arg1: i32) -> (i32, i32) {
    %c0_i32 = arith.constant 0 : i32
    %c0_i32_0 = arith.constant 0 : i32
    %c0_i32_1 = arith.constant 0 : i32
    return %c0_i32, %c0_i32_0 : i32, i32
  }
  func.func @transform_10(%arg0: i32, %arg1: i32) -> (i32, i32) {
    %c0_i32 = arith.constant 0 : i32
    %c0_i32_0 = arith.constant 0 : i32
    %c0_i32_1 = arith.constant 0 : i32
    return %c0_i32, %c0_i32_0 : i32, i32
  }
  func.func @transform_11(%arg0: i32, %arg1: i32) -> (i32, i32) {
    %c0_i32 = arith.constant 0 : i32
    %c0_i32_0 = arith.constant 0 : i32
    %c0_i32_1 = arith.constant 0 : i32
    return %c0_i32, %c0_i32_0 : i32, i32
  }
  func.func @transform_12(%arg0: i32, %arg1: i32) -> (i32, i32) {
    %c0_i32 = arith.constant 0 : i32
    %c0_i32_0 = arith.constant 0 : i32
    %c0_i32_1 = arith.constant 0 : i32
    return %c0_i32, %c0_i32_0 : i32, i32
  }
  func.func @transform_13(%arg0: i32, %arg1: i32) -> (i32, i32, i32) {
    %c0_i32 = arith.constant 0 : i32
    %c0_i32_0 = arith.constant 0 : i32
    return %arg0, %arg1, %c0_i32 : i32, i32, i32
  }
}

</mosaic_0001>

<llo_original>
// kernel: tpu_custom_call.1
$region0: #{tpu_custom_call.1}
  #allocation0 [shape = 'u32[]', space=smem, size = 0x4, offset = 0x4, fixed_abs, tag = 'smem constant byte address 0x4 - core index']
  #allocation1 [shape = 'u32[144,128]{1,0:T(1,128)}', space=vmem, size = 0x12000, scoped, tag = 'internal scratch']
  #allocation2 [shape = 'f32[8,32]{1,0:T(8,128)}', space=vmem, size = 0x1000, scoped, tag = 'scratch operand']
  %s0 = inlined_call_operand.hbm [shape: f32[2,16,32], index: 0, kind: input, shape index: {}]
  %s1 = inlined_call_operand.hbm [shape: f32[2,16,32], index: 1, kind: input, shape index: {}]
  %s2 = inlined_call_operand.hbm [shape: f32[2,16,32], index: 2, kind: input, shape index: {}]
  %s3 = inlined_call_operand.hbm [shape: f32[32,32], index: 3, kind: input, shape index: {}]
  %s4 = inlined_call_operand.vmem [shape: f32[1,32], index: 4, kind: input, shape index: {}]
  %s5 = inlined_call_operand.hbm [shape: f32[32,32], index: 5, kind: input, shape index: {}]
  %s6 = inlined_call_operand.vmem [shape: f32[1,32], index: 6, kind: input, shape index: {}]
  %s7 = inlined_call_operand.hbm [shape: f32[32,32], index: 7, kind: input, shape index: {}]
  %s8 = inlined_call_operand.hbm [shape: f32[1,32], index: 8, kind: input, shape index: {}]
  %s9 = inlined_call_operand.vmem [shape: f32[32,32], index: 9, kind: input, shape index: {}]
  %s10 = inlined_call_operand.vmem [shape: f32[1,32], index: 10, kind: input, shape index: {}]
  %s11 = inlined_call_operand.vmem [shape: f32[1,32], index: 11, kind: input, shape index: {}]
  %s12 = inlined_call_operand.vmem [shape: f32[1,32], index: 12, kind: input, shape index: {}]
  %s13 = inlined_call_operand.hbm [shape: f32[2,16,32], index: 13, kind: output, shape index: {}]
  %s14 = sld [smem:[#allocation0]]
  $region113: #{tpu_custom_call.1} parent=0
    _
  %s16 = ssub.s32 1, %s14
  %s17 = scalar_select 0, %s16, %s14
  $region1: #{tpu_custom_call.1} parent=0
    #allocation3 [shape = 'u8[8192]{0}', space=vmem, size = 0x2000, scoped, tag = 'input window, operand 0']
    #allocation4 [shape = 's32[2]{0}', space=sflag, size = 0x8, scoped, tag = 'scoped memory for tpu_custom_call.1']
    #allocation5 [shape = 's32[2]{0}', space=sflag, size = 0x8, scoped, tag = 'scoped memory for tpu_custom_call.1']
    #allocation6 [shape = 'u8[16384]{0}', space=vmem, size = 0x4000, scoped, tag = 'input window, operand 1']
    #allocation7 [shape = 's32[2]{0}', space=sflag, size = 0x8, scoped, tag = 'scoped memory for tpu_custom_call.1']
    #allocation8 [shape = 'u8[16384]{0}', space=vmem, size = 0x4000, scoped, tag = 'input window, operand 2']
    #allocation9 [shape = 'u8[16384]{0}', space=vmem, size = 0x4000, scoped, tag = 'input window, operand 3, single buffered']
    #allocation10 [shape = 's32[1]{0}', space=sflag, size = 0x4, scoped, tag = 'scoped memory for tpu_custom_call.1']
    #allocation11 [shape = 'u8[16384]{0}', space=vmem, size = 0x4000, scoped, tag = 'input window, operand 5, single buffered']
    #allocation12 [shape = 'u8[16384]{0}', space=vmem, size = 0x4000, scoped, tag = 'input window, operand 7, single buffered']
    #allocation13 [shape = 's32[1]{0}', space=sflag, size = 0x4, scoped, tag = 'scoped memory for tpu_custom_call.1']
    #allocation14 [shape = 'u8[512]{0}', space=vmem, size = 0x400, scoped, tag = 'input window, operand 8, single buffered']
    #allocation15 [shape = 'u8[8192]{0}', space=vmem, size = 0x2000, scoped, tag = 'output window, operand 0']
    %18 = vsyncpa [#allocation4], 0
    %s19 = scalar_lea.sflag [#allocation4], 1
    %20 = vsyncpa %s19, 0
    %21 = vsyncpa [#allocation7], 0
    %s22 = scalar_lea.sflag [#allocation7], 1
    %23 = vsyncpa %s22, 0
    %24 = vsyncpa [#allocation10], 0
    %25 = vsyncpa [#allocation13], 0
    %26 = vsyncpa [#allocation5], 0
    %s27 = scalar_lea.sflag [#allocation5], 1
    %28 = vsyncpa %s27, 0
    loop: start=0, step=1, limit=6
    $region2: #{tpu_custom_call.1} parent=1 // loop_pre_header
      _
    $region3: #{tpu_custom_call.1} parent=1 // loop_header
      %s30 = sphi 0, %s34
      %p31 = scmp.ge.s32.totalorder %s30, 6
      %s37 = sphi 0, %s49
      %s38 = sphi 0, %s45
      %s39 = sphi 0, %s37
      %s40 = sphi 0, %s38
      %s41 = sphi 0, %s39
      %s42 = sphi 0, %s40
      %s54 = sphi 0, %s56
      %s57 = sphi 0, %s54
      %s58 = sphi 0, %s57
      %s74 = sphi 0, %s58
      %s80 = sphi 0, %s82
      %s83 = sphi 0, %s80
      %s84 = sphi 0, %s83
      %s100 = sphi 0, %s84
      %s106 = sphi 0, %s108
      %s109 = sphi 0, %s106
      %s110 = sphi 0, %s109
      %s126 = sphi 0, %s110
      %s130 = sphi 0, %s130
      %s132 = sphi 0, %s130
      %s133 = sphi 0, %s132
      %s147 = sphi 0, %s133
      %s151 = sphi 0, %s151
      %s153 = sphi 0, %s151
      %s154 = sphi 0, %s153
      %s168 = sphi 0, %s154
      %s172 = sphi 0, %s172
      %s174 = sphi 0, %s172
      %s175 = sphi 0, %s174
      %s189 = sphi 0, %s175
      %s193 = sphi 0, %s193
      %s195 = sphi 0, %s193
      %s196 = sphi 0, %s195
      %s210 = sphi 0, %s196
      %s214 = sphi 0, %s214
      %s216 = sphi 0, %s214
      %s217 = sphi 0, %s216
      %s231 = sphi 0, %s217
      %s235 = sphi 0, %s235
      %s237 = sphi 0, %s235
      %s238 = sphi 0, %s237
      %s252 = sphi 0, %s238
      %s256 = sphi 0, %s256
      %s258 = sphi 0, %s256
      %s259 = sphi 0, %s258
      %s273 = sphi 0, %s259
      %s277 = sphi 0, %s277
      %s279 = sphi 0, %s277
      %s280 = sphi 0, %s279
      %s294 = sphi 0, %s280
      %s298 = sphi 0, %s298
      %s300 = sphi 0, %s298
      %s301 = sphi 0, %s300
      %s315 = sphi 0, %s301
      %s319 = sphi 0, %s319
      %s321 = sphi 0, %s319
      %s322 = sphi 0, %s321
      %s336 = sphi 0, %s322
      %s344 = sphi 0, %s346
      %s347 = sphi 0, %s344
      %s348 = sphi 0, %s347
      %s364 = sphi 0, %s348
    $region4: #{tpu_custom_call.1} parent=1 // loop_header_branch
      %33 = sbr.rel (%p31) target = $region8
    $region5: #{tpu_custom_call.1} parent=1 // loop_body
      %s35 = ssub.s32 %s30, 1
      %s36 = ssub.s32 %s30, 2
      %s43 = sadd.s32 1, %s38
      %p44 = scmp.ge.s32.totalorder %s43, 2
      %s45 = scalar_select %p44, 0, %s43
      %s46 = sadd.s32 1, %s37
      %s47 = scalar_select %p44, %s46, %s37
      %p48 = scmp.ge.s32.totalorder %s47, 2
      %s49 = scalar_select %p48, 0, %s47
      %s50 = ssub.s32 %s37, %s49
      %s51 = ssub.s32 %s38, %s45
      %s52 = sor.u32 %s50, %s51
      %p53 = scmp.eq.s32.totalorder %s52, 0
      %s55 = sadd.s32 %s54, 1
      %s56 = scalar_select %p53, %s54, %s55
      %p59 = pneg %p53
      %p60 = scmp.eq.s32.totalorder %s30, 3
      %p61 = por %p59, %p60
      %p62 = scmp.ne.s32.totalorder %s54, %s57
      %p63 = scmp.eq.s32.totalorder %s30, 0
      %p64 = por %p62, %p63
      %p65 = scmp.ne.s32.totalorder %s54, %s57
      %p66 = scmp.eq.s32.totalorder %s35, 3
      %p67 = por %p65, %p66
      %p68 = scmp.ne.s32.totalorder %s57, %s58
      %p69 = scmp.eq.s32.totalorder %s35, 0
      %p70 = por %p68, %p69
      %p71 = scmp.ne.s32.totalorder %s57, %s58
      %p72 = scmp.eq.s32.totalorder %s36, 3
      %p73 = por %p71, %p72
      %p75 = scmp.ne.s32.totalorder %s58, %s74
      %p76 = scmp.eq.s32.totalorder %s36, 0
      %p77 = por %p75, %p76
      %s78 = ssub.s32 %s37, %s49
      %p79 = scmp.eq.s32.totalorder %s78, 0
      %s81 = sadd.s32 %s80, 1
      %s82 = scalar_select %p79, %s80, %s81
      %p85 = pneg %p79
      %p86 = scmp.eq.s32.totalorder %s30, 3
      %p87 = por %p85, %p86
      %p88 = scmp.ne.s32.totalorder %s80, %s83
      %p89 = scmp.eq.s32.totalorder %s30, 0
      %p90 = por %p88, %p89
      %p91 = scmp.ne.s32.totalorder %s80, %s83
      %p92 = scmp.eq.s32.totalorder %s35, 3
      %p93 = por %p91, %p92
      %p94 = scmp.ne.s32.totalorder %s83, %s84
      %p95 = scmp.eq.s32.totalorder %s35, 0
      %p96 = por %p94, %p95
      %p97 = scmp.ne.s32.totalorder %s83, %s84
      %p98 = scmp.eq.s32.totalorder %s36, 3
      %p99 = por %p97, %p98
      %p101 = scmp.ne.s32.totalorder %s84, %s100
      %p102 = scmp.eq.s32.totalorder %s36, 0
      %p103 = por %p101, %p102
      %s104 = ssub.s32 %s37, %s49
      %p105 = scmp.eq.s32.totalorder %s104, 0
      %s107 = sadd.s32 %s106, 1
      %s108 = scalar_select %p105, %s106, %s107
      %p111 = pneg %p105
      %p112 = scmp.eq.s32.totalorder %s30, 3
      %p113 = por %p111, %p112
      %p114 = scmp.ne.s32.totalorder %s106, %s109
      %p115 = scmp.eq.s32.totalorder %s30, 0
      %p116 = por %p114, %p115
      %p117 = scmp.ne.s32.totalorder %s106, %s109
      %p118 = scmp.eq.s32.totalorder %s35, 3
      %p119 = por %p117, %p118
      %p120 = scmp.ne.s32.totalorder %s109, %s110
      %p121 = scmp.eq.s32.totalorder %s35, 0
      %p122 = por %p120, %p121
      %p123 = scmp.ne.s32.totalorder %s109, %s110
      %p124 = scmp.eq.s32.totalorder %s36, 3
      %p125 = por %p123, %p124
      %p127 = scmp.ne.s32.totalorder %s110, %s126
      %p128 = scmp.eq.s32.totalorder %s36, 0
      %p129 = por %p127, %p128
      %s131 = sadd.s32 %s130, 1
      %p134 = scmp.eq.s32.totalorder %s30, 3
      %p135 = scmp.ne.s32.totalorder %s130, %s132
      %p136 = scmp.eq.s32.totalorder %s30, 0
      %p137 = por %p135, %p136
      %p138 = scmp.ne.s32.totalorder %s130, %s132
      %p139 = scmp.eq.s32.totalorder %s35, 3
      %p140 = por %p138, %p139
      %p141 = scmp.ne.s32.totalorder %s132, %s133
      %p142 = scmp.eq.s32.totalorder %s35, 0
      %p143 = por %p141, %p142
      %p144 = scmp.ne.s32.totalorder %s132, %s133
      %p145 = scmp.eq.s32.totalorder %s36, 3
      %p146 = por %p144, %p145
      %p148 = scmp.ne.s32.totalorder %s133, %s147
      %p149 = scmp.eq.s32.totalorder %s36, 0
      %p150 = por %p148, %p149
      %s152 = sadd.s32 %s151, 1
      %p155 = scmp.eq.s32.totalorder %s30, 3
      %p156 = scmp.ne.s32.totalorder %s151, %s153
      %p157 = scmp.eq.s32.totalorder %s30, 0
      %p158 = por %p156, %p157
      %p159 = scmp.ne.s32.totalorder %s151, %s153
      %p160 = scmp.eq.s32.totalorder %s35, 3
      %p161 = por %p159, %p160
      %p162 = scmp.ne.s32.totalorder %s153, %s154
      %p163 = scmp.eq.s32.totalorder %s35, 0
      %p164 = por %p162, %p163
      %p165 = scmp.ne.s32.totalorder %s153, %s154
      %p166 = scmp.eq.s32.totalorder %s36, 3
      %p167 = por %p165, %p166
      %p169 = scmp.ne.s32.totalorder %s154, %s168
      %p170 = scmp.eq.s32.totalorder %s36, 0
      %p171 = por %p169, %p170
      %s173 = sadd.s32 %s172, 1
      %p176 = scmp.eq.s32.totalorder %s30, 3
      %p177 = scmp.ne.s32.totalorder %s172, %s174
      %p178 = scmp.eq.s32.totalorder %s30, 0
      %p179 = por %p177, %p178
      %p180 = scmp.ne.s32.totalorder %s172, %s174
      %p181 = scmp.eq.s32.totalorder %s35, 3
      %p182 = por %p180, %p181
      %p183 = scmp.ne.s32.totalorder %s174, %s175
      %p184 = scmp.eq.s32.totalorder %s35, 0
      %p185 = por %p183, %p184
      %p186 = scmp.ne.s32.totalorder %s174, %s175
      %p187 = scmp.eq.s32.totalorder %s36, 3
      %p188 = por %p186, %p187
      %p190 = scmp.ne.s32.totalorder %s175, %s189
      %p191 = scmp.eq.s32.totalorder %s36, 0
      %p192 = por %p190, %p191
      %s194 = sadd.s32 %s193, 1
      %p197 = scmp.eq.s32.totalorder %s30, 3
      %p198 = scmp.ne.s32.totalorder %s193, %s195
      %p199 = scmp.eq.s32.totalorder %s30, 0
      %p200 = por %p198, %p199
      %p201 = scmp.ne.s32.totalorder %s193, %s195
      %p202 = scmp.eq.s32.totalorder %s35, 3
      %p203 = por %p201, %p202
      %p204 = scmp.ne.s32.totalorder %s195, %s196
      %p205 = scmp.eq.s32.totalorder %s35, 0
      %p206 = por %p204, %p205
      %p207 = scmp.ne.s32.totalorder %s195, %s196
      %p208 = scmp.eq.s32.totalorder %s36, 3
      %p209 = por %p207, %p208
      %p211 = scmp.ne.s32.totalorder %s196, %s210
      %p212 = scmp.eq.s32.totalorder %s36, 0
      %p213 = por %p211, %p212
      %s215 = sadd.s32 %s214, 1
      %p218 = scmp.eq.s32.totalorder %s30, 3
      %p219 = scmp.ne.s32.totalorder %s214, %s216
      %p220 = scmp.eq.s32.totalorder %s30, 0
      %p221 = por %p219, %p220
      %p222 = scmp.ne.s32.totalorder %s214, %s216
      %p223 = scmp.eq.s32.totalorder %s35, 3
      %p224 = por %p222, %p223
      %p225 = scmp.ne.s32.totalorder %s216, %s217
      %p226 = scmp.eq.s32.totalorder %s35, 0
      %p227 = por %p225, %p226
      %p228 = scmp.ne.s32.totalorder %s216, %s217
      %p229 = scmp.eq.s32.totalorder %s36, 3
      %p230 = por %p228, %p229
      %p232 = scmp.ne.s32.totalorder %s217, %s231
      %p233 = scmp.eq.s32.totalorder %s36, 0
      %p234 = por %p232, %p233
      %s236 = sadd.s32 %s235, 1
      %p239 = scmp.eq.s32.totalorder %s30, 3
      %p240 = scmp.ne.s32.totalorder %s235, %s237
      %p241 = scmp.eq.s32.totalorder %s30, 0
      %p242 = por %p240, %p241
      %p243 = scmp.ne.s32.totalorder %s235, %s237
      %p244 = scmp.eq.s32.totalorder %s35, 3
      %p245 = por %p243, %p244
      %p246 = scmp.ne.s32.totalorder %s237, %s238
      %p247 = scmp.eq.s32.totalorder %s35, 0
      %p248 = por %p246, %p247
      %p249 = scmp.ne.s32.totalorder %s237, %s238
      %p250 = scmp.eq.s32.totalorder %s36, 3
      %p251 = por %p249, %p250
      %p253 = scmp.ne.s32.totalorder %s238, %s252
      %p254 = scmp.eq.s32.totalorder %s36, 0
      %p255 = por %p253, %p254
      %s257 = sadd.s32 %s256, 1
      %p260 = scmp.eq.s32.totalorder %s30, 3
      %p261 = scmp.ne.s32.totalorder %s256, %s258
      %p262 = scmp.eq.s32.totalorder %s30, 0
      %p263 = por %p261, %p262
      %p264 = scmp.ne.s32.totalorder %s256, %s258
      %p265 = scmp.eq.s32.totalorder %s35, 3
      %p266 = por %p264, %p265
      %p267 = scmp.ne.s32.totalorder %s258, %s259
      %p268 = scmp.eq.s32.totalorder %s35, 0
      %p269 = por %p267, %p268
      %p270 = scmp.ne.s32.totalorder %s258, %s259
      %p271 = scmp.eq.s32.totalorder %s36, 3
      %p272 = por %p270, %p271
      %p274 = scmp.ne.s32.totalorder %s259, %s273
      %p275 = scmp.eq.s32.totalorder %s36, 0
      %p276 = por %p274, %p275
      %s278 = sadd.s32 %s277, 1
      %p281 = scmp.eq.s32.totalorder %s30, 3
      %p282 = scmp.ne.s32.totalorder %s277, %s279
      %p283 = scmp.eq.s32.totalorder %s30, 0
      %p284 = por %p282, %p283
      %p285 = scmp.ne.s32.totalorder %s277, %s279
      %p286 = scmp.eq.s32.totalorder %s35, 3
      %p287 = por %p285, %p286
      %p288 = scmp.ne.s32.totalorder %s279, %s280
      %p289 = scmp.eq.s32.totalorder %s35, 0
      %p290 = por %p288, %p289
      %p291 = scmp.ne.s32.totalorder %s279, %s280
      %p292 = scmp.eq.s32.totalorder %s36, 3
      %p293 = por %p291, %p292
      %p295 = scmp.ne.s32.totalorder %s280, %s294
      %p296 = scmp.eq.s32.totalorder %s36, 0
      %p297 = por %p295, %p296
      %s299 = sadd.s32 %s298, 1
      %p302 = scmp.eq.s32.totalorder %s30, 3
      %p303 = scmp.ne.s32.totalorder %s298, %s300
      %p304 = scmp.eq.s32.totalorder %s30, 0
      %p305 = por %p303, %p304
      %p306 = scmp.ne.s32.totalorder %s298, %s300
      %p307 = scmp.eq.s32.totalorder %s35, 3
      %p308 = por %p306, %p307
      %p309 = scmp.ne.s32.totalorder %s300, %s301
      %p310 = scmp.eq.s32.totalorder %s35, 0
      %p311 = por %p309, %p310
      %p312 = scmp.ne.s32.totalorder %s300, %s301
      %p313 = scmp.eq.s32.totalorder %s36, 3
      %p314 = por %p312, %p313
      %p316 = scmp.ne.s32.totalorder %s301, %s315
      %p317 = scmp.eq.s32.totalorder %s36, 0
      %p318 = por %p316, %p317
      %s320 = sadd.s32 %s319, 1
      %p323 = scmp.eq.s32.totalorder %s30, 3
      %p324 = scmp.ne.s32.totalorder %s319, %s321
      %p325 = scmp.eq.s32.totalorder %s30, 0
      %p326 = por %p324, %p325
      %p327 = scmp.ne.s32.totalorder %s319, %s321
      %p328 = scmp.eq.s32.totalorder %s35, 3
      %p329 = por %p327, %p328
      %p330 = scmp.ne.s32.totalorder %s321, %s322
      %p331 = scmp.eq.s32.totalorder %s35, 0
      %p332 = por %p330, %p331
      %p333 = scmp.ne.s32.totalorder %s321, %s322
      %p334 = scmp.eq.s32.totalorder %s36, 3
      %p335 = por %p333, %p334
      %p337 = scmp.ne.s32.totalorder %s322, %s336
      %p338 = scmp.eq.s32.totalorder %s36, 0
      %p339 = por %p337, %p338
      %s340 = ssub.s32 %s37, %s49
      %s341 = ssub.s32 %s38, %s45
      %s342 = sor.u32 %s340, %s341
      %p343 = scmp.eq.s32.totalorder %s342, 0
      %s345 = sadd.s32 %s344, 1
      %s346 = scalar_select %p343, %s344, %s345
      %p349 = pneg %p343
      %p350 = scmp.eq.s32.totalorder %s30, 3
      %p351 = por %p349, %p350
      %p352 = scmp.ne.s32.totalorder %s344, %s347
      %p353 = scmp.eq.s32.totalorder %s30, 0
      %p354 = por %p352, %p353
      %p355 = scmp.ne.s32.totalorder %s344, %s347
      %p356 = scmp.eq.s32.totalorder %s35, 3
      %p357 = por %p355, %p356
      %p358 = scmp.ne.s32.totalorder %s347, %s348
      %p359 = scmp.eq.s32.totalorder %s35, 0
      %p360 = por %p358, %p359
      %p361 = scmp.ne.s32.totalorder %s347, %s348
      %p362 = scmp.eq.s32.totalorder %s36, 3
      %p363 = por %p361, %p362
      %p365 = scmp.ne.s32.totalorder %s348, %s364
      %p366 = scmp.eq.s32.totalorder %s36, 0
      %p367 = por %p365, %p366
      %p368 = scmp.le.s32.totalorder 1, %s30
      %p369 = scmp.lt.s32.totalorder %s30, 5
      %p370 = pnand %p368, %p369
      %p371 = pneg %p370
      // Predicated region
      $region9: #{tpu_custom_call.1} parent=5 // pred_check
        _
      $region10: #{tpu_custom_call.1} parent=5 // pred_check_branch
        %373 = sbr.rel (%p370) target = $region12
      $region11: #{tpu_custom_call.1} parent=5 // pred_region
        %s374 = ssub.s32 %s30, 1
        // Predicated region
        $region13: #{tpu_custom_call.1} parent=11 // pred_check
          %p375 = pneg %p143
        $region14: #{tpu_custom_call.1} parent=11 // pred_check_branch
          %377 = sbr.rel (%p375) target = $region16
        $region15: #{tpu_custom_call.1} parent=11 // pred_region
          %s379 = ssub.s32 512, 512
          %380 = vsyncadd [#allocation10], %s379
          %s381 = sshll.u32 [#allocation9], 4
          %s382 = int_to_ptr.vmem [resolvable:$true] %s381
          %387 = dma.hbm_to_vmem [thread:$0]  %s3, 512, %s382, [#allocation10], 128, 128, 8
        $region16: #{tpu_custom_call.1} parent=11 // pred_fallthru
          _
        // Predicated region
        $region17: #{tpu_custom_call.1} parent=11 // pred_check
          %p388 = pneg %p164
        $region18: #{tpu_custom_call.1} parent=11 // pred_check_branch
          %390 = sbr.rel (%p388) target = $region20
        $region19: #{tpu_custom_call.1} parent=11 // pred_region
          _
        $region20: #{tpu_custom_call.1} parent=11 // pred_fallthru
          _
        // Predicated region
        $region21: #{tpu_custom_call.1} parent=11 // pred_check
          %p391 = pneg %p185
        $region22: #{tpu_custom_call.1} parent=11 // pred_check_branch
          %393 = sbr.rel (%p391) target = $region24
        $region23: #{tpu_custom_call.1} parent=11 // pred_region
          %s395 = ssub.s32 512, 512
          %396 = vsyncadd [#allocation10], %s395
          %s397 = sshll.u32 [#allocation11], 4
          %s398 = int_to_ptr.vmem [resolvable:$true] %s397
          %403 = dma.hbm_to_vmem [thread:$0]  %s5, 512, %s398, [#allocation10], 128, 128, 8
        $region24: #{tpu_custom_call.1} parent=11 // pred_fallthru
          _
        // Predicated region
        $region25: #{tpu_custom_call.1} parent=11 // pred_check
          %p404 = pneg %p206
        $region26: #{tpu_custom_call.1} parent=11 // pred_check_branch
          %406 = sbr.rel (%p404) target = $region28
        $region27: #{tpu_custom_call.1} parent=11 // pred_region
          _
        $region28: #{tpu_custom_call.1} parent=11 // pred_fallthru
          _
        // Predicated region
        $region29: #{tpu_custom_call.1} parent=11 // pred_check
          %p407 = pneg %p227
        $region30: #{tpu_custom_call.1} parent=11 // pred_check_branch
          %409 = sbr.rel (%p407) target = $region32
        $region31: #{tpu_custom_call.1} parent=11 // pred_region
          %s411 = ssub.s32 512, 512
          %412 = vsyncadd [#allocation13], %s411
          %s413 = sshll.u32 [#allocation12], 4
          %s414 = int_to_ptr.vmem [resolvable:$true] %s413
          %419 = dma.hbm_to_vmem [thread:$0]  %s7, 512, %s414, [#allocation13], 128, 128, 8
        $region32: #{tpu_custom_call.1} parent=11 // pred_fallthru
          _
        // Predicated region
        $region33: #{tpu_custom_call.1} parent=11 // pred_check
          %p420 = pneg %p248
        $region34: #{tpu_custom_call.1} parent=11 // pred_check_branch
          %422 = sbr.rel (%p420) target = $region36
        $region35: #{tpu_custom_call.1} parent=11 // pred_region
          %s424 = ssub.s32 16, 16
          %425 = vsyncadd [#allocation13], %s424
          %s427 = sshll.u32 [#allocation14], 4
          %s428 = int_to_ptr.vmem [resolvable:$true] %s427
          %430 = dma.hbm_to_vmem [thread:$0]  %s8, 16, %s428, [#allocation13]
        $region36: #{tpu_custom_call.1} parent=11 // pred_fallthru
          _
        // Predicated region
        $region37: #{tpu_custom_call.1} parent=11 // pred_check
          %p431 = pneg %p269
        $region38: #{tpu_custom_call.1} parent=11 // pred_check_branch
          %433 = sbr.rel (%p431) target = $region40
        $region39: #{tpu_custom_call.1} parent=11 // pred_region
          _
        $region40: #{tpu_custom_call.1} parent=11 // pred_fallthru
          _
        // Predicated region
        $region41: #{tpu_custom_call.1} parent=11 // pred_check
          %p434 = pneg %p290
        $region42: #{tpu_custom_call.1} parent=11 // pred_check_branch
          %436 = sbr.rel (%p434) target = $region44
        $region43: #{tpu_custom_call.1} parent=11 // pred_region
          _
        $region44: #{tpu_custom_call.1} parent=11 // pred_fallthru
          _
        // Predicated region
        $region45: #{tpu_custom_call.1} parent=11 // pred_check
          %p437 = pneg %p311
        $region46: #{tpu_custom_call.1} parent=11 // pred_check_branch
          %439 = sbr.rel (%p437) target = $region48
        $region47: #{tpu_custom_call.1} parent=11 // pred_region
          _
        $region48: #{tpu_custom_call.1} parent=11 // pred_fallthru
          _
        // Predicated region
        $region49: #{tpu_custom_call.1} parent=11 // pred_check
          %p440 = pneg %p332
        $region50: #{tpu_custom_call.1} parent=11 // pred_check_branch
          %442 = sbr.rel (%p440) target = $region52
        $region51: #{tpu_custom_call.1} parent=11 // pred_region
          _
        $region52: #{tpu_custom_call.1} parent=11 // pred_fallthru
          _
      $region12: #{tpu_custom_call.1} parent=5 // pred_fallthru
        _
      %p443 = scmp.lt.s32.totalorder %s30, 4
      // Predicated region
      $region53: #{tpu_custom_call.1} parent=5 // pred_check
        %p444 = pneg %p443
      $region54: #{tpu_custom_call.1} parent=5 // pred_check_branch
        %446 = sbr.rel (%p444) target = $region56
      $region55: #{tpu_custom_call.1} parent=5 // pred_region
        // Predicated region
        $region57: #{tpu_custom_call.1} parent=55 // pred_check
          %p447 = pneg %p64
        $region58: #{tpu_custom_call.1} parent=55 // pred_check_branch
          %449 = sbr.rel (%p447) target = $region60
        $region59: #{tpu_custom_call.1} parent=55 // pred_region
          %s450 = sand.u32 %s54, 1
          %s451 = scalar_lea.sflag [#allocation4], %s450
          %s452 = sand.u32 %s54, 1
          %s453 = smul.addr %s452, 8
          %s454 = scalar_lea.vmem [#allocation3], %s453
          %s456 = ssub.s32 128, 128
          %457 = vsyncadd %s451, %s456
          %s458 = smul.addr %s37, 2
          %s459 = sadd.s32 %s38, %s458
          %s460 = smul.addr %s459, 128
          %s461 = scalar_lea.hbm %s0, %s460
          %s463 = sshll.u32 %s454, 4
          %s464 = int_to_ptr.vmem [resolvable:$true] %s463
          %466 = dma.hbm_to_vmem [thread:$0]  %s461, 128, %s464, %s451
        $region60: #{tpu_custom_call.1} parent=55 // pred_fallthru
          _
        // Predicated region
        $region61: #{tpu_custom_call.1} parent=55 // pred_check
          %p467 = pneg %p90
        $region62: #{tpu_custom_call.1} parent=55 // pred_check_branch
          %469 = sbr.rel (%p467) target = $region64
        $region63: #{tpu_custom_call.1} parent=55 // pred_region
          %s470 = sand.u32 %s30, 1
          %s471 = scalar_lea.sflag [#allocation7], %s470
          %s472 = sand.u32 %s80, 1
          %s473 = smul.addr %s472, 16
          %s474 = scalar_lea.vmem [#allocation6], %s473
          %s476 = ssub.s32 256, 256
          %477 = vsyncadd %s471, %s476
          %s478 = smul.addr %s37, 2
          %s479 = smul.addr %s478, 128
          %s480 = scalar_lea.hbm %s1, %s479
          %s481 = sshll.u32 %s474, 4
          %s482 = int_to_ptr.vmem [resolvable:$true] %s481
          %487 = dma.hbm_to_vmem [thread:$0]  %s480, 256, %s482, %s471, 128, 128, 8
        $region64: #{tpu_custom_call.1} parent=55 // pred_fallthru
          _
        // Predicated region
        $region65: #{tpu_custom_call.1} parent=55 // pred_check
          %p488 = pneg %p116
        $region66: #{tpu_custom_call.1} parent=55 // pred_check_branch
          %490 = sbr.rel (%p488) target = $region68
        $region67: #{tpu_custom_call.1} parent=55 // pred_region
          %s491 = sand.u32 %s30, 1
          %s492 = scalar_lea.sflag [#allocation7], %s491
          %s493 = sand.u32 %s106, 1
          %s494 = smul.addr %s493, 16
          %s495 = scalar_lea.vmem [#allocation8], %s494
          %s497 = ssub.s32 256, 256
          %498 = vsyncadd %s492, %s497
          %s499 = smul.addr %s37, 2
          %s500 = smul.addr %s499, 128
          %s501 = scalar_lea.hbm %s2, %s500
          %s502 = sshll.u32 %s495, 4
          %s503 = int_to_ptr.vmem [resolvable:$true] %s502
          %508 = dma.hbm_to_vmem [thread:$0]  %s501, 256, %s503, %s492, 128, 128, 8
        $region68: #{tpu_custom_call.1} parent=55 // pred_fallthru
          _
      $region56: #{tpu_custom_call.1} parent=5 // pred_fallthru
        _
      %p509 = scmp.le.s32.totalorder 1, %s30
      %p510 = scmp.lt.s32.totalorder %s30, 5
      %p511 = pnand %p509, %p510
      %p512 = pneg %p511
      // Predicated region
      $region69: #{tpu_custom_call.1} parent=5 // pred_check
        _
      $region70: #{tpu_custom_call.1} parent=5 // pred_check_branch
        %514 = sbr.rel (%p511) target = $region72
      $region71: #{tpu_custom_call.1} parent=5 // pred_region
        %s515 = ssub.s32 %s30, 1
        %s516 = sand.u32 %s57, 1
        %s517 = scalar_lea.sflag [#allocation4], %s516
        %s518 = sand.u32 %s57, 1
        %s519 = smul.addr %s518, 8
        %s520 = scalar_lea.vmem [#allocation3], %s519
        // Predicated region
        $region73: #{tpu_custom_call.1} parent=71 // pred_check
          %p521 = pneg %p70
        $region74: #{tpu_custom_call.1} parent=71 // pred_check_branch
          %523 = sbr.rel (%p521) target = $region76
        $region75: #{tpu_custom_call.1} parent=71 // pred_region
          %524 = dma.done %s517, 128
        $region76: #{tpu_custom_call.1} parent=71 // pred_fallthru
          _
        %s525 = sand.u32 %s35, 1
        %s526 = scalar_lea.sflag [#allocation7], %s525
        %s527 = sand.u32 %s83, 1
        %s528 = smul.addr %s527, 16
        %s529 = scalar_lea.vmem [#allocation6], %s528
        // Predicated region
        $region77: #{tpu_custom_call.1} parent=71 // pred_check
          %p530 = pneg %p96
        $region78: #{tpu_custom_call.1} parent=71 // pred_check_branch
          %532 = sbr.rel (%p530) target = $region80
        $region79: #{tpu_custom_call.1} parent=71 // pred_region
          %533 = dma.done %s526, 256
        $region80: #{tpu_custom_call.1} parent=71 // pred_fallthru
          _
        %s534 = sand.u32 %s35, 1
        %s535 = scalar_lea.sflag [#allocation7], %s534
        %s536 = sand.u32 %s109, 1
        %s537 = smul.addr %s536, 16
        %s538 = scalar_lea.vmem [#allocation8], %s537
        // Predicated region
        $region81: #{tpu_custom_call.1} parent=71 // pred_check
          %p539 = pneg %p122
        $region82: #{tpu_custom_call.1} parent=71 // pred_check_branch
          %541 = sbr.rel (%p539) target = $region84
        $region83: #{tpu_custom_call.1} parent=71 // pred_region
          %542 = dma.done %s535, 256
        $region84: #{tpu_custom_call.1} parent=71 // pred_fallthru
          _
        // Predicated region
        $region85: #{tpu_custom_call.1} parent=71 // pred_check
          %p543 = pneg %p143
        $region86: #{tpu_custom_call.1} parent=71 // pred_check_branch
          %545 = sbr.rel (%p543) target = $region88
        $region87: #{tpu_custom_call.1} parent=71 // pred_region
          %546 = dma.done [#allocation10], 512
        $region88: #{tpu_custom_call.1} parent=71 // pred_fallthru
          _
        // Predicated region
        $region89: #{tpu_custom_call.1} parent=71 // pred_check
          %p547 = pneg %p185
        $region90: #{tpu_custom_call.1} parent=71 // pred_check_branch
          %549 = sbr.rel (%p547) target = $region92
        $region91: #{tpu_custom_call.1} parent=71 // pred_region
          %550 = dma.done [#allocation10], 512
        $region92: #{tpu_custom_call.1} parent=71 // pred_fallthru
          _
        // Predicated region
        $region93: #{tpu_custom_call.1} parent=71 // pred_check
          %p551 = pneg %p227
        $region94: #{tpu_custom_call.1} parent=71 // pred_check_branch
          %553 = sbr.rel (%p551) target = $region96
        $region95: #{tpu_custom_call.1} parent=71 // pred_region
          %554 = dma.done [#allocation13], 512
        $region96: #{tpu_custom_call.1} parent=71 // pred_fallthru
          _
        // Predicated region
        $region97: #{tpu_custom_call.1} parent=71 // pred_check
          %p555 = pneg %p248
        $region98: #{tpu_custom_call.1} parent=71 // pred_check_branch
          %557 = sbr.rel (%p555) target = $region100
        $region99: #{tpu_custom_call.1} parent=71 // pred_region
          %558 = dma.done [#allocation13], 16
        $region100: #{tpu_custom_call.1} parent=71 // pred_fallthru
          _
        %s559 = sand.u32 %s57, 1
        %s560 = scalar_lea.sflag [#allocation4], %s559
        %s561 = sand.u32 %s57, 1
        %s562 = smul.addr %s561, 8
        %s563 = scalar_lea.vmem [#allocation3], %s562
        %p564 = pneg %p70
        %p565 = pneg %p67
        %s566 = sand.u32 %s35, 1
        %s567 = scalar_lea.sflag [#allocation7], %s566
        %s568 = sand.u32 %s83, 1
        %s569 = smul.addr %s568, 16
        %s570 = scalar_lea.vmem [#allocation6], %s569
        %p571 = pneg %p96
        %p572 = pneg %p93
        %s573 = sand.u32 %s35, 1
        %s574 = scalar_lea.sflag [#allocation7], %s573
        %s575 = sand.u32 %s109, 1
        %s576 = smul.addr %s575, 16
        %s577 = scalar_lea.vmem [#allocation8], %s576
        %p578 = pneg %p122
        %p579 = pneg %p119
        %p580 = pneg %p143
        %p581 = pneg %p140
        %p582 = pneg %p164
        %p583 = pneg %p161
        %p584 = pneg %p185
        %p585 = pneg %p182
        %p586 = pneg %p206
        %p587 = pneg %p203
        %p588 = pneg %p227
        %p589 = pneg %p224
        %p590 = pneg %p248
        %p591 = pneg %p245
        %p592 = pneg %p269
        %p593 = pneg %p266
        %p594 = pneg %p290
        %p595 = pneg %p287
        %p596 = pneg %p311
        %p597 = pneg %p308
        %p598 = pneg %p332
        %p599 = pneg %p329
        %p600 = pneg %p360
        %p601 = pneg %p357
        %s602 = sand.u32 %s347, 1
        %s603 = scalar_lea.sflag [#allocation5], %s602
        %s604 = sand.u32 %s347, 1
        %s605 = smul.addr %s604, 8
        %s606 = scalar_lea.vmem [#allocation15], %s605
        %v607 = vld [vmem:[%s520] sm:$0xff]
        %v608 = vld [vmem:[%s529] sm:$0xff]
        %v609 = vld [vmem:[%s529 + $0x8] sm:$0xff]
        %v610 = vld [vmem:[%s538] sm:$0xff]
        %v611 = vld [vmem:[%s538 + $0x8] sm:$0xff]
        %v612 = vld [vmem:[#allocation9] sm:$0xff]
        %v613 = vld [vmem:[#allocation9 + $0x8] sm:$0xff]
        %v614 = vld [vmem:[#allocation9 + $0x10] sm:$0xff]
        %v615 = vld [vmem:[#allocation9 + $0x18] sm:$0xff]
        %v616 = vld [vmem:[%s4] sm:$0x1]
        %v618 = vlaneseq
        %v619 = vshrl.u32 %v618, 7
        %v620 = vsub.s32 0, %v619
        %v621 = vrot.slane %v616, %v620
        %vm623 = vcmask 261120
        %v625 = vsel %vm623, %v607, 0
        %627 = vmatprep.subr.mxu0 0.0
        %628 = vmatpush1.msra.mxu0 %v612
        %629 = vmatprep.subr.mxu0 0.0
        %630 = vmatpush1.msra.mxu0 %v613
        %631 = vmatprep.subr.mxu0 0.0
        %632 = vmatpush1.msra.mxu0 %v614
        %633 = vmatprep.subr.mxu0 0.0
        %634 = vmatpush1.msra.mxu0 %v615
        %635 = vmatprep.subr.mxu0 0.0
        %636 = vmatpush1.msra.mxu0 0.0
        %637 = vmatprep.subr.mxu0 0.0
        %638 = vmatpush1.msra.mxu0 0.0
        %639 = vmatprep.subr.mxu0 0.0
        %640 = vmatpush1.msra.mxu0 0.0
        %641 = vmatprep.subr.mxu0 0.0
        %642 = vmatpush1.msra.mxu0 0.0
        %643 = vmatprep.subr.mxu0 0.0
        %644 = vmatpush1.msra.mxu0 0.0
        %645 = vmatprep.subr.mxu0 0.0
        %646 = vmatpush1.msra.mxu0 0.0
        %647 = vmatprep.subr.mxu0 0.0
        %648 = vmatpush1.msra.mxu0 0.0
        %649 = vmatprep.subr.mxu0 0.0
        %650 = vmatpush1.msra.mxu0 0.0
        %651 = vmatprep.subr.mxu0 0.0
        %652 = vmatpush1.msra.mxu0 0.0
        %653 = vmatprep.subr.mxu0 0.0
        %654 = vmatpush1.msra.mxu0 0.0
        %655 = vmatprep.subr.mxu0 0.0
        %656 = vmatpush1.msra.mxu0 0.0
        %657 = vmatprep.subr.mxu0 0.0
        %658 = vmatpush1.msra.mxu0 0.0
        %659 = vmatprep.subr.mxu0 0.0
        %660 = vmatpush1.msra.mxu0 0.0
        %661 = vmatprep.subr.mxu0 0.0
        %662 = vmatpush1.msra.mxu0 0.0
        %663 = vmatprep.subr.mxu0 0.0
        %664 = vmatpush1.msra.mxu0 0.0
        %665 = vmatprep.subr.mxu0 0.0
        %666 = vmatpush1.msra.mxu0 0.0
        %667 = vmatprep.subr.mxu0 0.0
        %668 = vmatpush1.msra.mxu0 0.0
        %669 = vmatprep.subr.mxu0 0.0
        %670 = vmatpush1.msra.mxu0 0.0
        %671 = vmatprep.subr.mxu0 0.0
        %672 = vmatpush1.msra.mxu0 0.0
        %673 = vmatprep.subr.mxu0 0.0
        %674 = vmatpush1.msra.mxu0 0.0
        %675 = vmatprep.subr.mxu0 0.0
        %676 = vmatpush1.msra.mxu0 0.0
        %677 = vmatprep.subr.mxu0 0.0
        %678 = vmatpush1.msra.mxu0 0.0
        %679 = vmatprep.subr.mxu0 0.0
        %680 = vmatpush1.msra.mxu0 0.0
        %681 = vmatprep.subr.mxu0 0.0
        %682 = vmatpush1.msra.mxu0 0.0
        %683 = vmatprep.subr.mxu0 0.0
        %684 = vmatpush1.msra.mxu0 0.0
        %685 = vmatprep.subr.mxu0 0.0
        %686 = vmatpush1.msra.mxu0 0.0
        %687 = vmatprep.subr.mxu0 0.0
        %688 = vmatpush1.msra.mxu0 0.0
        %689 = vmatprep.subr.mxu0 0.0
        %690 = vmatpush1.msra.mxu0 0.0
        %691 = vmatprep.mubr.f32.mxu0 0.0
        %692 = vmatmul.mubr.f32.gmra.mrb[0].mxu0 %v625
        %v693 = vpop.f32.mrb[0].mxu0
        %v694 = vadd.f32 %v621, %v693
        %v695 = vpop.f32.mrb[0].mxu0
        %696 = vdwg.mxu0
        %v697 = vld [vmem:[#allocation11] sm:$0xff]
        %v698 = vld [vmem:[#allocation11 + $0x8] sm:$0xff]
        %v699 = vld [vmem:[#allocation11 + $0x10] sm:$0xff]
        %v700 = vld [vmem:[#allocation11 + $0x18] sm:$0xff]
        %v701 = vld [vmem:[%s6] sm:$0x1]
        %v703 = vlaneseq
        %v704 = vshrl.u32 %v703, 7
        %v705 = vsub.s32 0, %v704
        %v706 = vrot.slane %v701, %v705
        %v709 = vsel %vm623, %v608, 0
        %v712 = vsel %vm623, %v609, 0
        %714 = vmatprep.subr.mxu0 0.0
        %715 = vmatpush1.msra.mxu0 %v697
        %716 = vmatprep.subr.mxu0 0.0
        %717 = vmatpush1.msra.mxu0 %v698
        %718 = vmatprep.subr.mxu0 0.0
        %719 = vmatpush1.msra.mxu0 %v699
        %720 = vmatprep.subr.mxu0 0.0
        %721 = vmatpush1.msra.mxu0 %v700
        %722 = vmatprep.subr.mxu0 0.0
        %723 = vmatpush1.msra.mxu0 0.0
        %724 = vmatprep.subr.mxu0 0.0
        %725 = vmatpush1.msra.mxu0 0.0
        %726 = vmatprep.subr.mxu0 0.0
        %727 = vmatpush1.msra.mxu0 0.0
        %728 = vmatprep.subr.mxu0 0.0
        %729 = vmatpush1.msra.mxu0 0.0
        %730 = vmatprep.subr.mxu0 0.0
        %731 = vmatpush1.msra.mxu0 0.0
        %732 = vmatprep.subr.mxu0 0.0
        %733 = vmatpush1.msra.mxu0 0.0
        %734 = vmatprep.subr.mxu0 0.0
        %735 = vmatpush1.msra.mxu0 0.0
        %736 = vmatprep.subr.mxu0 0.0
        %737 = vmatpush1.msra.mxu0 0.0
        %738 = vmatprep.subr.mxu0 0.0
        %739 = vmatpush1.msra.mxu0 0.0
        %740 = vmatprep.subr.mxu0 0.0
        %741 = vmatpush1.msra.mxu0 0.0
        %742 = vmatprep.subr.mxu0 0.0
        %743 = vmatpush1.msra.mxu0 0.0
        %744 = vmatprep.subr.mxu0 0.0
        %745 = vmatpush1.msra.mxu0 0.0
        %746 = vmatprep.subr.mxu0 0.0
        %747 = vmatpush1.msra.mxu0 0.0
        %748 = vmatprep.subr.mxu0 0.0
        %749 = vmatpush1.msra.mxu0 0.0
        %750 = vmatprep.subr.mxu0 0.0
        %751 = vmatpush1.msra.mxu0 0.0
        %752 = vmatprep.subr.mxu0 0.0
        %753 = vmatpush1.msra.mxu0 0.0
        %754 = vmatprep.subr.mxu0 0.0
        %755 = vmatpush1.msra.mxu0 0.0
        %756 = vmatprep.subr.mxu0 0.0
        %757 = vmatpush1.msra.mxu0 0.0
        %758 = vmatprep.subr.mxu0 0.0
        %759 = vmatpush1.msra.mxu0 0.0
        %760 = vmatprep.subr.mxu0 0.0
        %761 = vmatpush1.msra.mxu0 0.0
        %762 = vmatprep.subr.mxu0 0.0
        %763 = vmatpush1.msra.mxu0 0.0
        %764 = vmatprep.subr.mxu0 0.0
        %765 = vmatpush1.msra.mxu0 0.0
        %766 = vmatprep.subr.mxu0 0.0
        %767 = vmatpush1.msra.mxu0 0.0
        %768 = vmatprep.subr.mxu0 0.0
        %769 = vmatpush1.msra.mxu0 0.0
        %770 = vmatprep.subr.mxu0 0.0
        %771 = vmatpush1.msra.mxu0 0.0
        %772 = vmatprep.subr.mxu0 0.0
        %773 = vmatpush1.msra.mxu0 0.0
        %774 = vmatprep.subr.mxu0 0.0
        %775 = vmatpush1.msra.mxu0 0.0
        %776 = vmatprep.subr.mxu0 0.0
        %777 = vmatpush1.msra.mxu0 0.0
        %778 = vmatprep.mubr.f32.mxu0 0.0
        %779 = vmatmul.mubr.f32.gmra.mrb[0].mxu0 %v709
        %v780 = vpop.f32.mrb[0].mxu0
        %v781 = vadd.f32 %v706, %v780
        %v782 = vpop.f32.mrb[0].mxu0
        %783 = vmatprep.mubr.f32.mxu0 0.0
        %784 = vmatmul.mubr.f32.gmra.mrb[0].mxu0 %v712
        %v785 = vpop.f32.mrb[0].mxu0
        %v786 = vadd.f32 %v706, %v785
        %v787 = vpop.f32.mrb[0].mxu0
        %788 = vdwg.mxu0
        %v789 = vld [vmem:[#allocation12] sm:$0xff]
        %v790 = vld [vmem:[#allocation12 + $0x8] sm:$0xff]
        %v791 = vld [vmem:[#allocation12 + $0x10] sm:$0xff]
        %v792 = vld [vmem:[#allocation12 + $0x18] sm:$0xff]
        %v793 = vld [vmem:[#allocation14] sm:$0x1]
        %v795 = vlaneseq
        %v796 = vshrl.u32 %v795, 7
        %v797 = vsub.s32 0, %v796
        %v798 = vrot.slane %v793, %v797
        %v801 = vsel %vm623, %v610, 0
        %v804 = vsel %vm623, %v611, 0
        %806 = vmatprep.subr.mxu0 0.0
        %807 = vmatpush1.msra.mxu0 %v789
        %808 = vmatprep.subr.mxu0 0.0
        %809 = vmatpush1.msra.mxu0 %v790
        %810 = vmatprep.subr.mxu0 0.0
        %811 = vmatpush1.msra.mxu0 %v791
        %812 = vmatprep.subr.mxu0 0.0
        %813 = vmatpush1.msra.mxu0 %v792
        %814 = vmatprep.subr.mxu0 0.0
        %815 = vmatpush1.msra.mxu0 0.0
        %816 = vmatprep.subr.mxu0 0.0
        %817 = vmatpush1.msra.mxu0 0.0
        %818 = vmatprep.subr.mxu0 0.0
        %819 = vmatpush1.msra.mxu0 0.0
        %820 = vmatprep.subr.mxu0 0.0
        %821 = vmatpush1.msra.mxu0 0.0
        %822 = vmatprep.subr.mxu0 0.0
        %823 = vmatpush1.msra.mxu0 0.0
        %824 = vmatprep.subr.mxu0 0.0
        %825 = vmatpush1.msra.mxu0 0.0
        %826 = vmatprep.subr.mxu0 0.0
        %827 = vmatpush1.msra.mxu0 0.0
        %828 = vmatprep.subr.mxu0 0.0
        %829 = vmatpush1.msra.mxu0 0.0
        %830 = vmatprep.subr.mxu0 0.0
        %831 = vmatpush1.msra.mxu0 0.0
        %832 = vmatprep.subr.mxu0 0.0
        %833 = vmatpush1.msra.mxu0 0.0
        %834 = vmatprep.subr.mxu0 0.0
        %835 = vmatpush1.msra.mxu0 0.0
        %836 = vmatprep.subr.mxu0 0.0
        %837 = vmatpush1.msra.mxu0 0.0
        %838 = vmatprep.subr.mxu0 0.0
        %839 = vmatpush1.msra.mxu0 0.0
        %840 = vmatprep.subr.mxu0 0.0
        %841 = vmatpush1.msra.mxu0 0.0
        %842 = vmatprep.subr.mxu0 0.0
        %843 = vmatpush1.msra.mxu0 0.0
        %844 = vmatprep.subr.mxu0 0.0
        %845 = vmatpush1.msra.mxu0 0.0
        %846 = vmatprep.subr.mxu0 0.0
        %847 = vmatpush1.msra.mxu0 0.0
        %848 = vmatprep.subr.mxu0 0.0
        %849 = vmatpush1.msra.mxu0 0.0
        %850 = vmatprep.subr.mxu0 0.0
        %851 = vmatpush1.msra.mxu0 0.0
        %852 = vmatprep.subr.mxu0 0.0
        %853 = vmatpush1.msra.mxu0 0.0
        %854 = vmatprep.subr.mxu0 0.0
        %855 = vmatpush1.msra.mxu0 0.0
        %856 = vmatprep.subr.mxu0 0.0
        %857 = vmatpush1.msra.mxu0 0.0
        %858 = vmatprep.subr.mxu0 0.0
        %859 = vmatpush1.msra.mxu0 0.0
        %860 = vmatprep.subr.mxu0 0.0
        %861 = vmatpush1.msra.mxu0 0.0
        %862 = vmatprep.subr.mxu0 0.0
        %863 = vmatpush1.msra.mxu0 0.0
        %864 = vmatprep.subr.mxu0 0.0
        %865 = vmatpush1.msra.mxu0 0.0
        %866 = vmatprep.subr.mxu0 0.0
        %867 = vmatpush1.msra.mxu0 0.0
        %868 = vmatprep.subr.mxu0 0.0
        %869 = vmatpush1.msra.mxu0 0.0
        %870 = vmatprep.mubr.f32.mxu0 0.0
        %871 = vmatmul.mubr.f32.gmra.mrb[0].mxu0 %v801
        %v872 = vpop.f32.mrb[0].mxu0
        %v873 = vadd.f32 %v798, %v872
        %v874 = vpop.f32.mrb[0].mxu0
        %875 = vmatprep.mubr.f32.mxu0 0.0
        %876 = vmatmul.mubr.f32.gmra.mrb[0].mxu0 %v804
        %v877 = vpop.f32.mrb[0].mxu0
        %v878 = vadd.f32 %v798, %v877
        %v879 = vpop.f32.mrb[0].mxu0
        %880 = vdwg.mxu0
        %vm881 = vcmask 64512
        %v883 = vsel %vm881, %v694, 0
        %v886 = vsel %vm881, %v781, 0
        %v889 = vsel %vm881, %v786, 0
        %891 = vmatprep.subr.mxu0 0.0
        %892 = vmatpush1.xpose.msra.mxu0 %v886
        %893 = vmatprep.subr.mxu0 0.0
        %894 = vmatpush1.xpose.msra.mxu0 %v889
        %895 = vmatprep.subr.mxu0 0.0
        %896 = vmatpush1.xpose.msra.mxu0 0.0
        %897 = vmatprep.subr.mxu0 0.0
        %898 = vmatpush1.xpose.msra.mxu0 0.0
        %899 = vmatprep.subr.mxu0 0.0
        %900 = vmatpush1.xpose.msra.mxu0 0.0
        %901 = vmatprep.subr.mxu0 0.0
        %902 = vmatpush1.xpose.msra.mxu0 0.0
        %903 = vmatprep.subr.mxu0 0.0
        %904 = vmatpush1.xpose.msra.mxu0 0.0
        %905 = vmatprep.subr.mxu0 0.0
        %906 = vmatpush1.xpose.msra.mxu0 0.0
        %907 = vmatprep.subr.mxu0 0.0
        %908 = vmatpush1.xpose.msra.mxu0 0.0
        %909 = vmatprep.subr.mxu0 0.0
        %910 = vmatpush1.xpose.msra.mxu0 0.0
        %911 = vmatprep.subr.mxu0 0.0
        %912 = vmatpush1.xpose.msra.mxu0 0.0
        %913 = vmatprep.subr.mxu0 0.0
        %914 = vmatpush1.xpose.msra.mxu0 0.0
        %915 = vmatprep.subr.mxu0 0.0
        %916 = vmatpush1.xpose.msra.mxu0 0.0
        %917 = vmatprep.subr.mxu0 0.0
        %918 = vmatpush1.xpose.msra.mxu0 0.0
        %919 = vmatprep.subr.mxu0 0.0
        %920 = vmatpush1.xpose.msra.mxu0 0.0
        %921 = vmatprep.subr.mxu0 0.0
        %922 = vmatpush1.xpose.msra.mxu0 0.0
        %923 = vmatprep.subr.mxu0 0.0
        %924 = vmatpush1.xpose.msra.mxu0 0.0
        %925 = vmatprep.subr.mxu0 0.0
        %926 = vmatpush1.xpose.msra.mxu0 0.0
        %927 = vmatprep.subr.mxu0 0.0
        %928 = vmatpush1.xpose.msra.mxu0 0.0
        %929 = vmatprep.subr.mxu0 0.0
        %930 = vmatpush1.xpose.msra.mxu0 0.0
        %931 = vmatprep.subr.mxu0 0.0
        %932 = vmatpush1.xpose.msra.mxu0 0.0
        %933 = vmatprep.subr.mxu0 0.0
        %934 = vmatpush1.xpose.msra.mxu0 0.0
        %935 = vmatprep.subr.mxu0 0.0
        %936 = vmatpush1.xpose.msra.mxu0 0.0
        %937 = vmatprep.subr.mxu0 0.0
        %938 = vmatpush1.xpose.msra.mxu0 0.0
        %939 = vmatprep.subr.mxu0 0.0
        %940 = vmatpush1.xpose.msra.mxu0 0.0
        %941 = vmatprep.subr.mxu0 0.0
        %942 = vmatpush1.xpose.msra.mxu0 0.0
        %943 = vmatprep.subr.mxu0 0.0
        %944 = vmatpush1.xpose.msra.mxu0 0.0
        %945 = vmatprep.subr.mxu0 0.0
        %946 = vmatpush1.xpose.msra.mxu0 0.0
        %947 = vmatprep.subr.mxu0 0.0
        %948 = vmatpush1.xpose.msra.mxu0 0.0
        %949 = vmatprep.subr.mxu0 0.0
        %950 = vmatpush1.xpose.msra.mxu0 0.0
        %951 = vmatprep.subr.mxu0 0.0
        %952 = vmatpush1.xpose.msra.mxu0 0.0
        %953 = vmatprep.subr.mxu0 0.0
        %954 = vmatpush1.xpose.msra.mxu0 0.0
        %955 = vmatprep.mubr.f32.mxu0 0.0
        %956 = vmatmul.mubr.f32.gmra.mrb[0].mxu0 %v883
        %v957 = vpop.f32.mrb[0].mxu0
        %v958 = vadd.f32 0.0, %v957
        %v959 = vpop.f32.mrb[0].mxu0
        %960 = vdwg.mxu0
        %vm961 = vcmask 130048
        %v962 = vsel %vm961, %v958, -inf
        %963 = vmax.xlane.f32.xlu0 %v962
        %v964 = vpop.xlane.xlu0 %963
        %v965 = vsub.f32 %v958, %v964
        %v966 = vmul.f32 %v965, 1.442695
        %v967 = vpow.pop %v966
        %v968 = vsel %vm961, %v967, 0.0
        %969 = vadd.xlane.f32.xlu0 %v968
        %v970 = vpop.xlane.xlu0 %969
        %v972 = vsel %vm961, %v967, 0
        %974 = vmatprep.subr.mxu0 0.0
        %975 = vmatpush1.msra.mxu0 %v873
        %976 = vmatprep.subr.mxu0 0.0
        %977 = vmatpush1.msra.mxu0 %v878
        %978 = vmatprep.subr.mxu0 0.0
        %979 = vmatpush1.msra.mxu0 0.0
        %980 = vmatprep.subr.mxu0 0.0
        %981 = vmatpush1.msra.mxu0 0.0
        %982 = vmatprep.subr.mxu0 0.0
        %983 = vmatpush1.msra.mxu0 0.0
        %984 = vmatprep.subr.mxu0 0.0
        %985 = vmatpush1.msra.mxu0 0.0
        %986 = vmatprep.subr.mxu0 0.0
        %987 = vmatpush1.msra.mxu0 0.0
        %988 = vmatprep.subr.mxu0 0.0
        %989 = vmatpush1.msra.mxu0 0.0
        %990 = vmatprep.subr.mxu0 0.0
        %991 = vmatpush1.msra.mxu0 0.0
        %992 = vmatprep.subr.mxu0 0.0
        %993 = vmatpush1.msra.mxu0 0.0
        %994 = vmatprep.subr.mxu0 0.0
        %995 = vmatpush1.msra.mxu0 0.0
        %996 = vmatprep.subr.mxu0 0.0
        %997 = vmatpush1.msra.mxu0 0.0
        %998 = vmatprep.subr.mxu0 0.0
        %999 = vmatpush1.msra.mxu0 0.0
        %1000 = vmatprep.subr.mxu0 0.0
        %1001 = vmatpush1.msra.mxu0 0.0
        %1002 = vmatprep.subr.mxu0 0.0
        %1003 = vmatpush1.msra.mxu0 0.0
        %1004 = vmatprep.subr.mxu0 0.0
        %1005 = vmatpush1.msra.mxu0 0.0
        %1006 = vmatprep.subr.mxu0 0.0
        %1007 = vmatpush1.msra.mxu0 0.0
        %1008 = vmatprep.subr.mxu0 0.0
        %1009 = vmatpush1.msra.mxu0 0.0
        %1010 = vmatprep.subr.mxu0 0.0
        %1011 = vmatpush1.msra.mxu0 0.0
        %1012 = vmatprep.subr.mxu0 0.0
        %1013 = vmatpush1.msra.mxu0 0.0
        %1014 = vmatprep.subr.mxu0 0.0
        %1015 = vmatpush1.msra.mxu0 0.0
        %1016 = vmatprep.subr.mxu0 0.0
        %1017 = vmatpush1.msra.mxu0 0.0
        %1018 = vmatprep.subr.mxu0 0.0
        %1019 = vmatpush1.msra.mxu0 0.0
        %1020 = vmatprep.subr.mxu0 0.0
        %1021 = vmatpush1.msra.mxu0 0.0
        %1022 = vmatprep.subr.mxu0 0.0
        %1023 = vmatpush1.msra.mxu0 0.0
        %1024 = vmatprep.subr.mxu0 0.0
        %1025 = vmatpush1.msra.mxu0 0.0
        %1026 = vmatprep.subr.mxu0 0.0
        %1027 = vmatpush1.msra.mxu0 0.0
        %1028 = vmatprep.subr.mxu0 0.0
        %1029 = vmatpush1.msra.mxu0 0.0
        %1030 = vmatprep.subr.mxu0 0.0
        %1031 = vmatpush1.msra.mxu0 0.0
        %1032 = vmatprep.subr.mxu0 0.0
        %1033 = vmatpush1.msra.mxu0 0.0
        %1034 = vmatprep.subr.mxu0 0.0
        %1035 = vmatpush1.msra.mxu0 0.0
        %1036 = vmatprep.subr.mxu0 0.0
        %1037 = vmatpush1.msra.mxu0 0.0
        %1038 = vmatprep.mubr.f32.mxu0 0.0
        %1039 = vmatmul.mubr.f32.gmra.mrb[0].mxu0 %v972
        %v1040 = vpop.f32.mrb[0].mxu0
        %v1041 = vadd.f32 0.0, %v1040
        %v1042 = vpop.f32.mrb[0].mxu0
        %1043 = vdwg.mxu0
        %v1044 = vrcp.pop %v970
        %v1045 = vmul.f32 %v1041, %v1044
        %1046 = vst.msk [vmem:[#allocation2] sm:$0xff] %vm881, %v1045
        %1047 = vrot.lane.b32.xlu0 %v694, 120
        %v1048 = vpop.permute.xlu0 %1047
        %1049 = vrot.lane.b32.xlu0 %v781, 120
        %v1050 = vpop.permute.xlu0 %1049
        %1051 = vrot.lane.b32.xlu0 %v786, 120
        %v1052 = vpop.permute.xlu0 %1051
        %v1053 = vsel %vm881, %v1048, 0
        %v1055 = vsel %vm881, %v1050, 0
        %v1057 = vsel %vm881, %v1052, 0
        %1059 = vmatprep.subr.mxu0 0.0
        %1060 = vmatpush1.xpose.msra.mxu0 %v1055
        %1061 = vmatprep.subr.mxu0 0.0
        %1062 = vmatpush1.xpose.msra.mxu0 %v1057
        %1063 = vmatprep.subr.mxu0 0.0
        %1064 = vmatpush1.xpose.msra.mxu0 0.0
        %1065 = vmatprep.subr.mxu0 0.0
        %1066 = vmatpush1.xpose.msra.mxu0 0.0
        %1067 = vmatprep.subr.mxu0 0.0
        %1068 = vmatpush1.xpose.msra.mxu0 0.0
        %1069 = vmatprep.subr.mxu0 0.0
        %1070 = vmatpush1.xpose.msra.mxu0 0.0
        %1071 = vmatprep.subr.mxu0 0.0
        %1072 = vmatpush1.xpose.msra.mxu0 0.0
        %1073 = vmatprep.subr.mxu0 0.0
        %1074 = vmatpush1.xpose.msra.mxu0 0.0
        %1075 = vmatprep.subr.mxu0 0.0
        %1076 = vmatpush1.xpose.msra.mxu0 0.0
        %1077 = vmatprep.subr.mxu0 0.0
        %1078 = vmatpush1.xpose.msra.mxu0 0.0
        %1079 = vmatprep.subr.mxu0 0.0
        %1080 = vmatpush1.xpose.msra.mxu0 0.0
        %1081 = vmatprep.subr.mxu0 0.0
        %1082 = vmatpush1.xpose.msra.mxu0 0.0
        %1083 = vmatprep.subr.mxu0 0.0
        %1084 = vmatpush1.xpose.msra.mxu0 0.0
        %1085 = vmatprep.subr.mxu0 0.0
        %1086 = vmatpush1.xpose.msra.mxu0 0.0
        %1087 = vmatprep.subr.mxu0 0.0
        %1088 = vmatpush1.xpose.msra.mxu0 0.0
        %1089 = vmatprep.subr.mxu0 0.0
        %1090 = vmatpush1.xpose.msra.mxu0 0.0
        %1091 = vmatprep.subr.mxu0 0.0
        %1092 = vmatpush1.xpose.msra.mxu0 0.0
        %1093 = vmatprep.subr.mxu0 0.0
        %1094 = vmatpush1.xpose.msra.mxu0 0.0
        %1095 = vmatprep.subr.mxu0 0.0
        %1096 = vmatpush1.xpose.msra.mxu0 0.0
        %1097 = vmatprep.subr.mxu0 0.0
        %1098 = vmatpush1.xpose.msra.mxu0 0.0
        %1099 = vmatprep.subr.mxu0 0.0
        %1100 = vmatpush1.xpose.msra.mxu0 0.0
        %1101 = vmatprep.subr.mxu0 0.0
        %1102 = vmatpush1.xpose.msra.mxu0 0.0
        %1103 = vmatprep.subr.mxu0 0.0
        %1104 = vmatpush1.xpose.msra.mxu0 0.0
        %1105 = vmatprep.subr.mxu0 0.0
        %1106 = vmatpush1.xpose.msra.mxu0 0.0
        %1107 = vmatprep.subr.mxu0 0.0
        %1108 = vmatpush1.xpose.msra.mxu0 0.0
        %1109 = vmatprep.subr.mxu0 0.0
        %1110 = vmatpush1.xpose.msra.mxu0 0.0
        %1111 = vmatprep.subr.mxu0 0.0
        %1112 = vmatpush1.xpose.msra.mxu0 0.0
        %1113 = vmatprep.subr.mxu0 0.0
        %1114 = vmatpush1.xpose.msra.mxu0 0.0
        %1115 = vmatprep.subr.mxu0 0.0
        %1116 = vmatpush1.xpose.msra.mxu0 0.0
        %1117 = vmatprep.subr.mxu0 0.0
        %1118 = vmatpush1.xpose.msra.mxu0 0.0
        %1119 = vmatprep.subr.mxu0 0.0
        %1120 = vmatpush1.xpose.msra.mxu0 0.0
        %1121 = vmatprep.subr.mxu0 0.0
        %1122 = vmatpush1.xpose.msra.mxu0 0.0
        %1123 = vmatprep.mubr.f32.mxu0 0.0
        %1124 = vmatmul.mubr.f32.gmra.mrb[0].mxu0 %v1053
        %v1125 = vpop.f32.mrb[0].mxu0
        %v1126 = vadd.f32 0.0, %v1125
        %v1127 = vpop.f32.mrb[0].mxu0
        %1128 = vdwg.mxu0
        %v1129 = vsel %vm961, %v1126, -inf
        %1130 = vmax.xlane.f32.xlu0 %v1129
        %v1131 = vpop.xlane.xlu0 %1130
        %v1132 = vsub.f32 %v1126, %v1131
        %v1133 = vmul.f32 %v1132, 1.442695
        %v1134 = vpow.pop %v1133
        %v1135 = vsel %vm961, %v1134, 0.0
        %1136 = vadd.xlane.f32.xlu0 %v1135
        %v1137 = vpop.xlane.xlu0 %1136
        %1140 = vrot.lane.b32.xlu0 %v873, 120
        %v1141 = vpop.permute.xlu0 %1140
        %1142 = vrot.lane.b32.xlu0 %v878, 120
        %v1143 = vpop.permute.xlu0 %1142
        %v1147 = vsel %vm961, %v1134, 0
        %1149 = vmatprep.subr.mxu0 0.0
        %1150 = vmatpush1.msra.mxu0 %v1141
        %1151 = vmatprep.subr.mxu0 0.0
        %1152 = vmatpush1.msra.mxu0 %v1143
        %1153 = vmatprep.subr.mxu0 0.0
        %1154 = vmatpush1.msra.mxu0 0.0
        %1155 = vmatprep.subr.mxu0 0.0
        %1156 = vmatpush1.msra.mxu0 0.0
        %1157 = vmatprep.subr.mxu0 0.0
        %1158 = vmatpush1.msra.mxu0 0.0
        %1159 = vmatprep.subr.mxu0 0.0
        %1160 = vmatpush1.msra.mxu0 0.0
        %1161 = vmatprep.subr.mxu0 0.0
        %1162 = vmatpush1.msra.mxu0 0.0
        %1163 = vmatprep.subr.mxu0 0.0
        %1164 = vmatpush1.msra.mxu0 0.0
        %1165 = vmatprep.subr.mxu0 0.0
        %1166 = vmatpush1.msra.mxu0 0.0
        %1167 = vmatprep.subr.mxu0 0.0
        %1168 = vmatpush1.msra.mxu0 0.0
        %1169 = vmatprep.subr.mxu0 0.0
        %1170 = vmatpush1.msra.mxu0 0.0
        %1171 = vmatprep.subr.mxu0 0.0
        %1172 = vmatpush1.msra.mxu0 0.0
        %1173 = vmatprep.subr.mxu0 0.0
        %1174 = vmatpush1.msra.mxu0 0.0
        %1175 = vmatprep.subr.mxu0 0.0
        %1176 = vmatpush1.msra.mxu0 0.0
        %1177 = vmatprep.subr.mxu0 0.0
        %1178 = vmatpush1.msra.mxu0 0.0
        %1179 = vmatprep.subr.mxu0 0.0
        %1180 = vmatpush1.msra.mxu0 0.0
        %1181 = vmatprep.subr.mxu0 0.0
        %1182 = vmatpush1.msra.mxu0 0.0
        %1183 = vmatprep.subr.mxu0 0.0
        %1184 = vmatpush1.msra.mxu0 0.0
        %1185 = vmatprep.subr.mxu0 0.0
        %1186 = vmatpush1.msra.mxu0 0.0
        %1187 = vmatprep.subr.mxu0 0.0
        %1188 = vmatpush1.msra.mxu0 0.0
        %1189 = vmatprep.subr.mxu0 0.0
        %1190 = vmatpush1.msra.mxu0 0.0
        %1191 = vmatprep.subr.mxu0 0.0
        %1192 = vmatpush1.msra.mxu0 0.0
        %1193 = vmatprep.subr.mxu0 0.0
        %1194 = vmatpush1.msra.mxu0 0.0
        %1195 = vmatprep.subr.mxu0 0.0
        %1196 = vmatpush1.msra.mxu0 0.0
        %1197 = vmatprep.subr.mxu0 0.0
        %1198 = vmatpush1.msra.mxu0 0.0
        %1199 = vmatprep.subr.mxu0 0.0
        %1200 = vmatpush1.msra.mxu0 0.0
        %1201 = vmatprep.subr.mxu0 0.0
        %1202 = vmatpush1.msra.mxu0 0.0
        %1203 = vmatprep.subr.mxu0 0.0
        %1204 = vmatpush1.msra.mxu0 0.0
        %1205 = vmatprep.subr.mxu0 0.0
        %1206 = vmatpush1.msra.mxu0 0.0
        %1207 = vmatprep.subr.mxu0 0.0
        %1208 = vmatpush1.msra.mxu0 0.0
        %1209 = vmatprep.subr.mxu0 0.0
        %1210 = vmatpush1.msra.mxu0 0.0
        %1211 = vmatprep.subr.mxu0 0.0
        %1212 = vmatpush1.msra.mxu0 0.0
        %1213 = vmatprep.mubr.f32.mxu0 0.0
        %1214 = vmatmul.mubr.f32.gmra.mrb[0].mxu0 %v1147
        %v1215 = vpop.f32.mrb[0].mxu0
        %v1216 = vadd.f32 0.0, %v1215
        %v1217 = vpop.f32.mrb[0].mxu0
        %1218 = vdwg.mxu0
        %v1219 = vrcp.pop %v1137
        %v1220 = vmul.f32 %v1216, %v1219
        %1222 = vrot.lane.b32.xlu0 %v1220, 8
        %v1223 = vpop.permute.xlu0 %1222
        %vm1225 = vcmask 130112
        %1226 = vst.msk [vmem:[#allocation2] sm:$0xff] %vm1225, %v1223
        %1227 = vrot.lane.b32.xlu0 %v694, 112
        %v1228 = vpop.permute.xlu0 %1227
        %1229 = vrot.lane.b32.xlu0 %v781, 112
        %v1230 = vpop.permute.xlu0 %1229
        %1231 = vrot.lane.b32.xlu0 %v786, 112
        %v1232 = vpop.permute.xlu0 %1231
        %v1233 = vsel %vm881, %v1228, 0
        %v1235 = vsel %vm881, %v1230, 0
        %v1237 = vsel %vm881, %v1232, 0
        %1239 = vmatprep.subr.mxu0 0.0
        %1240 = vmatpush1.xpose.msra.mxu0 %v1235
        %1241 = vmatprep.subr.mxu0 0.0
        %1242 = vmatpush1.xpose.msra.mxu0 %v1237
        %1243 = vmatprep.subr.mxu0 0.0
        %1244 = vmatpush1.xpose.msra.mxu0 0.0
        %1245 = vmatprep.subr.mxu0 0.0
        %1246 = vmatpush1.xpose.msra.mxu0 0.0
        %1247 = vmatprep.subr.mxu0 0.0
        %1248 = vmatpush1.xpose.msra.mxu0 0.0
        %1249 = vmatprep.subr.mxu0 0.0
        %1250 = vmatpush1.xpose.msra.mxu0 0.0
        %1251 = vmatprep.subr.mxu0 0.0
        %1252 = vmatpush1.xpose.msra.mxu0 0.0
        %1253 = vmatprep.subr.mxu0 0.0
        %1254 = vmatpush1.xpose.msra.mxu0 0.0
        %1255 = vmatprep.subr.mxu0 0.0
        %1256 = vmatpush1.xpose.msra.mxu0 0.0
        %1257 = vmatprep.subr.mxu0 0.0
        %1258 = vmatpush1.xpose.msra.mxu0 0.0
        %1259 = vmatprep.subr.mxu0 0.0
        %1260 = vmatpush1.xpose.msra.mxu0 0.0
        %1261 = vmatprep.subr.mxu0 0.0
        %1262 = vmatpush1.xpose.msra.mxu0 0.0
        %1263 = vmatprep.subr.mxu0 0.0
        %1264 = vmatpush1.xpose.msra.mxu0 0.0
        %1265 = vmatprep.subr.mxu0 0.0
        %1266 = vmatpush1.xpose.msra.mxu0 0.0
        %1267 = vmatprep.subr.mxu0 0.0
        %1268 = vmatpush1.xpose.msra.mxu0 0.0
        %1269 = vmatprep.subr.mxu0 0.0
        %1270 = vmatpush1.xpose.msra.mxu0 0.0
        %1271 = vmatprep.subr.mxu0 0.0
        %1272 = vmatpush1.xpose.msra.mxu0 0.0
        %1273 = vmatprep.subr.mxu0 0.0
        %1274 = vmatpush1.xpose.msra.mxu0 0.0
        %1275 = vmatprep.subr.mxu0 0.0
        %1276 = vmatpush1.xpose.msra.mxu0 0.0
        %1277 = vmatprep.subr.mxu0 0.0
        %1278 = vmatpush1.xpose.msra.mxu0 0.0
        %1279 = vmatprep.subr.mxu0 0.0
        %1280 = vmatpush1.xpose.msra.mxu0 0.0
        %1281 = vmatprep.subr.mxu0 0.0
        %1282 = vmatpush1.xpose.msra.mxu0 0.0
        %1283 = vmatprep.subr.mxu0 0.0
        %1284 = vmatpush1.xpose.msra.mxu0 0.0
        %1285 = vmatprep.subr.mxu0 0.0
        %1286 = vmatpush1.xpose.msra.mxu0 0.0
        %1287 = vmatprep.subr.mxu0 0.0
        %1288 = vmatpush1.xpose.msra.mxu0 0.0
        %1289 = vmatprep.subr.mxu0 0.0
        %1290 = vmatpush1.xpose.msra.mxu0 0.0
        %1291 = vmatprep.subr.mxu0 0.0
        %1292 = vmatpush1.xpose.msra.mxu0 0.0
        %1293 = vmatprep.subr.mxu0 0.0
        %1294 = vmatpush1.xpose.msra.mxu0 0.0
        %1295 = vmatprep.subr.mxu0 0.0
        %1296 = vmatpush1.xpose.msra.mxu0 0.0
        %1297 = vmatprep.subr.mxu0 0.0
        %1298 = vmatpush1.xpose.msra.mxu0 0.0
        %1299 = vmatprep.subr.mxu0 0.0
        %1300 = vmatpush1.xpose.msra.mxu0 0.0
        %1301 = vmatprep.subr.mxu0 0.0
        %1302 = vmatpush1.xpose.msra.mxu0 0.0
        %1303 = vmatprep.mubr.f32.mxu0 0.0
        %1304 = vmatmul.mubr.f32.gmra.mrb[0].mxu0 %v1233
        %v1305 = vpop.f32.mrb[0].mxu0
        %v1306 = vadd.f32 0.0, %v1305
        %v1307 = vpop.f32.mrb[0].mxu0
        %1308 = vdwg.mxu0
        %v1309 = vsel %vm961, %v1306, -inf
        %1310 = vmax.xlane.f32.xlu0 %v1309
        %v1311 = vpop.xlane.xlu0 %1310
        %v1312 = vsub.f32 %v1306, %v1311
        %v1313 = vmul.f32 %v1312, 1.442695
        %v1314 = vpow.pop %v1313
        %v1315 = vsel %vm961, %v1314, 0.0
        %1316 = vadd.xlane.f32.xlu0 %v1315
        %v1317 = vpop.xlane.xlu0 %1316
        %1318 = vrot.lane.b32.xlu0 %v873, 112
        %v1319 = vpop.permute.xlu0 %1318
        %1320 = vrot.lane.b32.xlu0 %v878, 112
        %v1321 = vpop.permute.xlu0 %1320
        %v1325 = vsel %vm961, %v1314, 0
        %1327 = vmatprep.subr.mxu0 0.0
        %1328 = vmatpush1.msra.mxu0 %v1319
        %1329 = vmatprep.subr.mxu0 0.0
        %1330 = vmatpush1.msra.mxu0 %v1321
        %1331 = vmatprep.subr.mxu0 0.0
        %1332 = vmatpush1.msra.mxu0 0.0
        %1333 = vmatprep.subr.mxu0 0.0
        %1334 = vmatpush1.msra.mxu0 0.0
        %1335 = vmatprep.subr.mxu0 0.0
        %1336 = vmatpush1.msra.mxu0 0.0
        %1337 = vmatprep.subr.mxu0 0.0
        %1338 = vmatpush1.msra.mxu0 0.0
        %1339 = vmatprep.subr.mxu0 0.0
        %1340 = vmatpush1.msra.mxu0 0.0
        %1341 = vmatprep.subr.mxu0 0.0
        %1342 = vmatpush1.msra.mxu0 0.0
        %1343 = vmatprep.subr.mxu0 0.0
        %1344 = vmatpush1.msra.mxu0 0.0
        %1345 = vmatprep.subr.mxu0 0.0
        %1346 = vmatpush1.msra.mxu0 0.0
        %1347 = vmatprep.subr.mxu0 0.0
        %1348 = vmatpush1.msra.mxu0 0.0
        %1349 = vmatprep.subr.mxu0 0.0
        %1350 = vmatpush1.msra.mxu0 0.0
        %1351 = vmatprep.subr.mxu0 0.0
        %1352 = vmatpush1.msra.mxu0 0.0
        %1353 = vmatprep.subr.mxu0 0.0
        %1354 = vmatpush1.msra.mxu0 0.0
        %1355 = vmatprep.subr.mxu0 0.0
        %1356 = vmatpush1.msra.mxu0 0.0
        %1357 = vmatprep.subr.mxu0 0.0
        %1358 = vmatpush1.msra.mxu0 0.0
        %1359 = vmatprep.subr.mxu0 0.0
        %1360 = vmatpush1.msra.mxu0 0.0
        %1361 = vmatprep.subr.mxu0 0.0
        %1362 = vmatpush1.msra.mxu0 0.0
        %1363 = vmatprep.subr.mxu0 0.0
        %1364 = vmatpush1.msra.mxu0 0.0
        %1365 = vmatprep.subr.mxu0 0.0
        %1366 = vmatpush1.msra.mxu0 0.0
        %1367 = vmatprep.subr.mxu0 0.0
        %1368 = vmatpush1.msra.mxu0 0.0
        %1369 = vmatprep.subr.mxu0 0.0
        %1370 = vmatpush1.msra.mxu0 0.0
        %1371 = vmatprep.subr.mxu0 0.0
        %1372 = vmatpush1.msra.mxu0 0.0
        %1373 = vmatprep.subr.mxu0 0.0
        %1374 = vmatpush1.msra.mxu0 0.0
        %1375 = vmatprep.subr.mxu0 0.0
        %1376 = vmatpush1.msra.mxu0 0.0
        %1377 = vmatprep.subr.mxu0 0.0
        %1378 = vmatpush1.msra.mxu0 0.0
        %1379 = vmatprep.subr.mxu0 0.0
        %1380 = vmatpush1.msra.mxu0 0.0
        %1381 = vmatprep.subr.mxu0 0.0
        %1382 = vmatpush1.msra.mxu0 0.0
        %1383 = vmatprep.subr.mxu0 0.0
        %1384 = vmatpush1.msra.mxu0 0.0
        %1385 = vmatprep.subr.mxu0 0.0
        %1386 = vmatpush1.msra.mxu0 0.0
        %1387 = vmatprep.subr.mxu0 0.0
        %1388 = vmatpush1.msra.mxu0 0.0
        %1389 = vmatprep.subr.mxu0 0.0
        %1390 = vmatpush1.msra.mxu0 0.0
        %1391 = vmatprep.mubr.f32.mxu0 0.0
        %1392 = vmatmul.mubr.f32.gmra.mrb[0].mxu0 %v1325
        %v1393 = vpop.f32.mrb[0].mxu0
        %v1394 = vadd.f32 0.0, %v1393
        %v1395 = vpop.f32.mrb[0].mxu0
        %1396 = vdwg.mxu0
        %v1397 = vrcp.pop %v1317
        %v1398 = vmul.f32 %v1394, %v1397
        %1400 = vrot.lane.b32.xlu0 %v1398, 16
        %v1401 = vpop.permute.xlu0 %1400
        %vm1403 = vcmask 195712
        %1404 = vst.msk [vmem:[#allocation2] sm:$0xff] %vm1403, %v1401
        %1405 = vrot.lane.b32.xlu0 %v694, 104
        %v1406 = vpop.permute.xlu0 %1405
        %1407 = vrot.lane.b32.xlu0 %v781, 104
        %v1408 = vpop.permute.xlu0 %1407
        %1409 = vrot.lane.b32.xlu0 %v786, 104
        %v1410 = vpop.permute.xlu0 %1409
        %v1411 = vsel %vm881, %v1406, 0
        %v1413 = vsel %vm881, %v1408, 0
        %v1415 = vsel %vm881, %v1410, 0
        %1417 = vmatprep.subr.mxu0 0.0
        %1418 = vmatpush1.xpose.msra.mxu0 %v1413
        %1419 = vmatprep.subr.mxu0 0.0
        %1420 = vmatpush1.xpose.msra.mxu0 %v1415
        %1421 = vmatprep.subr.mxu0 0.0
        %1422 = vmatpush1.xpose.msra.mxu0 0.0
        %1423 = vmatprep.subr.mxu0 0.0
        %1424 = vmatpush1.xpose.msra.mxu0 0.0
        %1425 = vmatprep.subr.mxu0 0.0
        %1426 = vmatpush1.xpose.msra.mxu0 0.0
        %1427 = vmatprep.subr.mxu0 0.0
        %1428 = vmatpush1.xpose.msra.mxu0 0.0
        %1429 = vmatprep.subr.mxu0 0.0
        %1430 = vmatpush1.xpose.msra.mxu0 0.0
        %1431 = vmatprep.subr.mxu0 0.0
        %1432 = vmatpush1.xpose.msra.mxu0 0.0
        %1433 = vmatprep.subr.mxu0 0.0
        %1434 = vmatpush1.xpose.msra.mxu0 0.0
        %1435 = vmatprep.subr.mxu0 0.0
        %1436 = vmatpush1.xpose.msra.mxu0 0.0
        %1437 = vmatprep.subr.mxu0 0.0
        %1438 = vmatpush1.xpose.msra.mxu0 0.0
        %1439 = vmatprep.subr.mxu0 0.0
        %1440 = vmatpush1.xpose.msra.mxu0 0.0
        %1441 = vmatprep.subr.mxu0 0.0
        %1442 = vmatpush1.xpose.msra.mxu0 0.0
        %1443 = vmatprep.subr.mxu0 0.0
        %1444 = vmatpush1.xpose.msra.mxu0 0.0
        %1445 = vmatprep.subr.mxu0 0.0
        %1446 = vmatpush1.xpose.msra.mxu0 0.0
        %1447 = vmatprep.subr.mxu0 0.0
        %1448 = vmatpush1.xpose.msra.mxu0 0.0
        %1449 = vmatprep.subr.mxu0 0.0
        %1450 = vmatpush1.xpose.msra.mxu0 0.0
        %1451 = vmatprep.subr.mxu0 0.0
        %1452 = vmatpush1.xpose.msra.mxu0 0.0
        %1453 = vmatprep.subr.mxu0 0.0
        %1454 = vmatpush1.xpose.msra.mxu0 0.0
        %1455 = vmatprep.subr.mxu0 0.0
        %1456 = vmatpush1.xpose.msra.mxu0 0.0
        %1457 = vmatprep.subr.mxu0 0.0
        %1458 = vmatpush1.xpose.msra.mxu0 0.0
        %1459 = vmatprep.subr.mxu0 0.0
        %1460 = vmatpush1.xpose.msra.mxu0 0.0
        %1461 = vmatprep.subr.mxu0 0.0
        %1462 = vmatpush1.xpose.msra.mxu0 0.0
        %1463 = vmatprep.subr.mxu0 0.0
        %1464 = vmatpush1.xpose.msra.mxu0 0.0
        %1465 = vmatprep.subr.mxu0 0.0
        %1466 = vmatpush1.xpose.msra.mxu0 0.0
        %1467 = vmatprep.subr.mxu0 0.0
        %1468 = vmatpush1.xpose.msra.mxu0 0.0
        %1469 = vmatprep.subr.mxu0 0.0
        %1470 = vmatpush1.xpose.msra.mxu0 0.0
        %1471 = vmatprep.subr.mxu0 0.0
        %1472 = vmatpush1.xpose.msra.mxu0 0.0
        %1473 = vmatprep.subr.mxu0 0.0
        %1474 = vmatpush1.xpose.msra.mxu0 0.0
        %1475 = vmatprep.subr.mxu0 0.0
        %1476 = vmatpush1.xpose.msra.mxu0 0.0
        %1477 = vmatprep.subr.mxu0 0.0
        %1478 = vmatpush1.xpose.msra.mxu0 0.0
        %1479 = vmatprep.subr.mxu0 0.0
        %1480 = vmatpush1.xpose.msra.mxu0 0.0
        %1481 = vmatprep.mubr.f32.mxu0 0.0
        %1482 = vmatmul.mubr.f32.gmra.mrb[0].mxu0 %v1411
        %v1483 = vpop.f32.mrb[0].mxu0
        %v1484 = vadd.f32 0.0, %v1483
        %v1485 = vpop.f32.mrb[0].mxu0
        %1486 = vdwg.mxu0
        %v1487 = vsel %vm961, %v1484, -inf
        %1488 = vmax.xlane.f32.xlu0 %v1487
        %v1489 = vpop.xlane.xlu0 %1488
        %v1490 = vsub.f32 %v1484, %v1489
        %v1491 = vmul.f32 %v1490, 1.442695
        %v1492 = vpow.pop %v1491
        %v1493 = vsel %vm961, %v1492, 0.0
        %1494 = vadd.xlane.f32.xlu0 %v1493
        %v1495 = vpop.xlane.xlu0 %1494
        %1496 = vrot.lane.b32.xlu0 %v873, 104
        %v1497 = vpop.permute.xlu0 %1496
        %1498 = vrot.lane.b32.xlu0 %v878, 104
        %v1499 = vpop.permute.xlu0 %1498
        %v1503 = vsel %vm961, %v1492, 0
        %1505 = vmatprep.subr.mxu0 0.0
        %1506 = vmatpush1.msra.mxu0 %v1497
        %1507 = vmatprep.subr.mxu0 0.0
        %1508 = vmatpush1.msra.mxu0 %v1499
        %1509 = vmatprep.subr.mxu0 0.0
        %1510 = vmatpush1.msra.mxu0 0.0
        %1511 = vmatprep.subr.mxu0 0.0
        %1512 = vmatpush1.msra.mxu0 0.0
        %1513 = vmatprep.subr.mxu0 0.0
        %1514 = vmatpush1.msra.mxu0 0.0
        %1515 = vmatprep.subr.mxu0 0.0
        %1516 = vmatpush1.msra.mxu0 0.0
        %1517 = vmatprep.subr.mxu0 0.0
        %1518 = vmatpush1.msra.mxu0 0.0
        %1519 = vmatprep.subr.mxu0 0.0
        %1520 = vmatpush1.msra.mxu0 0.0
        %1521 = vmatprep.subr.mxu0 0.0
        %1522 = vmatpush1.msra.mxu0 0.0
        %1523 = vmatprep.subr.mxu0 0.0
        %1524 = vmatpush1.msra.mxu0 0.0
        %1525 = vmatprep.subr.mxu0 0.0
        %1526 = vmatpush1.msra.mxu0 0.0
        %1527 = vmatprep.subr.mxu0 0.0
        %1528 = vmatpush1.msra.mxu0 0.0
        %1529 = vmatprep.subr.mxu0 0.0
        %1530 = vmatpush1.msra.mxu0 0.0
        %1531 = vmatprep.subr.mxu0 0.0
        %1532 = vmatpush1.msra.mxu0 0.0
        %1533 = vmatprep.subr.mxu0 0.0
        %1534 = vmatpush1.msra.mxu0 0.0
        %1535 = vmatprep.subr.mxu0 0.0
        %1536 = vmatpush1.msra.mxu0 0.0
        %1537 = vmatprep.subr.mxu0 0.0
        %1538 = vmatpush1.msra.mxu0 0.0
        %1539 = vmatprep.subr.mxu0 0.0
        %1540 = vmatpush1.msra.mxu0 0.0
        %1541 = vmatprep.subr.mxu0 0.0
        %1542 = vmatpush1.msra.mxu0 0.0
        %1543 = vmatprep.subr.mxu0 0.0
        %1544 = vmatpush1.msra.mxu0 0.0
        %1545 = vmatprep.subr.mxu0 0.0
        %1546 = vmatpush1.msra.mxu0 0.0
        %1547 = vmatprep.subr.mxu0 0.0
        %1548 = vmatpush1.msra.mxu0 0.0
        %1549 = vmatprep.subr.mxu0 0.0
        %1550 = vmatpush1.msra.mxu0 0.0
        %1551 = vmatprep.subr.mxu0 0.0
        %1552 = vmatpush1.msra.mxu0 0.0
        %1553 = vmatprep.subr.mxu0 0.0
        %1554 = vmatpush1.msra.mxu0 0.0
        %1555 = vmatprep.subr.mxu0 0.0
        %1556 = vmatpush1.msra.mxu0 0.0
        %1557 = vmatprep.subr.mxu0 0.0
        %1558 = vmatpush1.msra.mxu0 0.0
        %1559 = vmatprep.subr.mxu0 0.0
        %1560 = vmatpush1.msra.mxu0 0.0
        %1561 = vmatprep.subr.mxu0 0.0
        %1562 = vmatpush1.msra.mxu0 0.0
        %1563 = vmatprep.subr.mxu0 0.0
        %1564 = vmatpush1.msra.mxu0 0.0
        %1565 = vmatprep.subr.mxu0 0.0
        %1566 = vmatpush1.msra.mxu0 0.0
        %1567 = vmatprep.subr.mxu0 0.0
        %1568 = vmatpush1.msra.mxu0 0.0
        %1569 = vmatprep.mubr.f32.mxu0 0.0
        %1570 = vmatmul.mubr.f32.gmra.mrb[0].mxu0 %v1503
        %v1571 = vpop.f32.mrb[0].mxu0
        %v1572 = vadd.f32 0.0, %v1571
        %v1573 = vpop.f32.mrb[0].mxu0
        %1574 = vdwg.mxu0
        %v1575 = vrcp.pop %v1495
        %v1576 = vmul.f32 %v1572, %v1575
        %1578 = vrot.lane.b32.xlu0 %v1576, 24
        %v1579 = vpop.permute.xlu0 %1578
        %vm1581 = vcmask 261312
        %1582 = vst.msk [vmem:[#allocation2] sm:$0xff] %vm1581, %v1579
        %v1583 = vld [vmem:[#allocation2] sm:$0xff]
        %v1584 = vld [vmem:[%s9] sm:$0xff]
        %v1585 = vld [vmem:[%s9 + $0x8] sm:$0xff]
        %v1586 = vld [vmem:[%s9 + $0x10] sm:$0xff]
        %v1587 = vld [vmem:[%s9 + $0x18] sm:$0xff]
        %v1588 = vld [vmem:[%s10] sm:$0x1]
        %v1590 = vlaneseq
        %v1591 = vshrl.u32 %v1590, 7
        %v1592 = vsub.s32 0, %v1591
        %v1593 = vrot.slane %v1588, %v1592
        %v1596 = vsel %vm623, %v1583, 0
        %1598 = vmatprep.subr.mxu0 0.0
        %1599 = vmatpush1.msra.mxu0 %v1584
        %1600 = vmatprep.subr.mxu0 0.0
        %1601 = vmatpush1.msra.mxu0 %v1585
        %1602 = vmatprep.subr.mxu0 0.0
        %1603 = vmatpush1.msra.mxu0 %v1586
        %1604 = vmatprep.subr.mxu0 0.0
        %1605 = vmatpush1.msra.mxu0 %v1587
        %1606 = vmatprep.subr.mxu0 0.0
        %1607 = vmatpush1.msra.mxu0 0.0
        %1608 = vmatprep.subr.mxu0 0.0
        %1609 = vmatpush1.msra.mxu0 0.0
        %1610 = vmatprep.subr.mxu0 0.0
        %1611 = vmatpush1.msra.mxu0 0.0
        %1612 = vmatprep.subr.mxu0 0.0
        %1613 = vmatpush1.msra.mxu0 0.0
        %1614 = vmatprep.subr.mxu0 0.0
        %1615 = vmatpush1.msra.mxu0 0.0
        %1616 = vmatprep.subr.mxu0 0.0
        %1617 = vmatpush1.msra.mxu0 0.0
        %1618 = vmatprep.subr.mxu0 0.0
        %1619 = vmatpush1.msra.mxu0 0.0
        %1620 = vmatprep.subr.mxu0 0.0
        %1621 = vmatpush1.msra.mxu0 0.0
        %1622 = vmatprep.subr.mxu0 0.0
        %1623 = vmatpush1.msra.mxu0 0.0
        %1624 = vmatprep.subr.mxu0 0.0
        %1625 = vmatpush1.msra.mxu0 0.0
        %1626 = vmatprep.subr.mxu0 0.0
        %1627 = vmatpush1.msra.mxu0 0.0
        %1628 = vmatprep.subr.mxu0 0.0
        %1629 = vmatpush1.msra.mxu0 0.0
        %1630 = vmatprep.subr.mxu0 0.0
        %1631 = vmatpush1.msra.mxu0 0.0
        %1632 = vmatprep.subr.mxu0 0.0
        %1633 = vmatpush1.msra.mxu0 0.0
        %1634 = vmatprep.subr.mxu0 0.0
        %1635 = vmatpush1.msra.mxu0 0.0
        %1636 = vmatprep.subr.mxu0 0.0
        %1637 = vmatpush1.msra.mxu0 0.0
        %1638 = vmatprep.subr.mxu0 0.0
        %1639 = vmatpush1.msra.mxu0 0.0
        %1640 = vmatprep.subr.mxu0 0.0
        %1641 = vmatpush1.msra.mxu0 0.0
        %1642 = vmatprep.subr.mxu0 0.0
        %1643 = vmatpush1.msra.mxu0 0.0
        %1644 = vmatprep.subr.mxu0 0.0
        %1645 = vmatpush1.msra.mxu0 0.0
        %1646 = vmatprep.subr.mxu0 0.0
        %1647 = vmatpush1.msra.mxu0 0.0
        %1648 = vmatprep.subr.mxu0 0.0
        %1649 = vmatpush1.msra.mxu0 0.0
        %1650 = vmatprep.subr.mxu0 0.0
        %1651 = vmatpush1.msra.mxu0 0.0
        %1652 = vmatprep.subr.mxu0 0.0
        %1653 = vmatpush1.msra.mxu0 0.0
        %1654 = vmatprep.subr.mxu0 0.0
        %1655 = vmatpush1.msra.mxu0 0.0
        %1656 = vmatprep.subr.mxu0 0.0
        %1657 = vmatpush1.msra.mxu0 0.0
        %1658 = vmatprep.subr.mxu0 0.0
        %1659 = vmatpush1.msra.mxu0 0.0
        %1660 = vmatprep.subr.mxu0 0.0
        %1661 = vmatpush1.msra.mxu0 0.0
        %1662 = vmatprep.mubr.f32.mxu0 0.0
        %1663 = vmatmul.mubr.f32.gmra.mrb[0].mxu0 %v1596
        %v1664 = vpop.f32.mrb[0].mxu0
        %v1665 = vadd.f32 %v1593, %v1664
        %v1666 = vpop.f32.mrb[0].mxu0
        %1667 = vdwg.mxu0
        %v1668 = vadd.f32 %v607, %v1665
        %v1669 = vsel %vm623, %v1668, 0.0
        %1670 = vadd.xlane.f32.xlu0 %v1669
        %v1671 = vpop.xlane.xlu0 %1670
        %v1672 = vrcp.pop 32.0
        %v1673 = vmul.f32 %v1671, %v1672
        %v1674 = vsub.f32 %v1668, %v1673
        %v1675 = vmul.f32 %v1674, %v1674
        %v1676 = vsel %vm623, %v1675, 0.0
        %1677 = vadd.xlane.f32.xlu0 %v1676
        %v1678 = vpop.xlane.xlu0 %1677
        %v1679 = vmul.f32 %v1678, %v1672
        %v1680 = vadd.f32 %v1679, 1e-05
        %v1681 = vrsqrt.pop %v1680
        %v1682 = vmul.f32 %v1674, %v1681
        %v1683 = vld [vmem:[%s11] sm:$0x1]
        %v1685 = vlaneseq
        %v1686 = vshrl.u32 %v1685, 7
        %v1687 = vsub.s32 0, %v1686
        %v1688 = vrot.slane %v1683, %v1687
        %v1690 = vmul.f32 %v1682, %v1688
        %v1691 = vld [vmem:[%s12] sm:$0x1]
        %v1693 = vlaneseq
        %v1694 = vshrl.u32 %v1693, 7
        %v1695 = vsub.s32 0, %v1694
        %v1696 = vrot.slane %v1691, %v1695
        %v1698 = vadd.f32 %v1690, %v1696
        %1699 = vst.msk [vmem:[%s606] sm:$0xff] %vm623, %v1698
        %s1700 = sand.u32 %s347, 1
        %s1701 = scalar_lea.sflag [#allocation5], %s1700
        %s1702 = sand.u32 %s347, 1
        %s1703 = smul.addr %s1702, 8
        %s1704 = scalar_lea.vmem [#allocation15], %s1703
        // Predicated region
        $region101: #{tpu_custom_call.1} parent=71 // pred_check
          %p1705 = pneg %p357
        $region102: #{tpu_custom_call.1} parent=71 // pred_check_branch
          %1707 = sbr.rel (%p1705) target = $region104
        $region103: #{tpu_custom_call.1} parent=71 // pred_region
          %s1709 = ssub.s32 128, 128
          %1710 = vsyncadd %s1701, %s1709
          %s1711 = smul.addr %s39, 2
          %s1712 = sadd.s32 %s40, %s1711
          %s1713 = smul.addr %s1712, 128
          %s1714 = scalar_lea.hbm %s13, %s1713
          %s1716 = sshll.u32 %s1704, 4
          %s1717 = int_to_ptr.vmem [resolvable:$true] %s1716
          %1719 = dma.vmem_to_hbm [thread:$0]  %s1717, 128, %s1714, %s1701
        $region104: #{tpu_custom_call.1} parent=71 // pred_fallthru
          _
      $region72: #{tpu_custom_call.1} parent=5 // pred_fallthru
        _
      %p1720 = scmp.le.s32.totalorder 2, %s30
      // Predicated region
      $region105: #{tpu_custom_call.1} parent=5 // pred_check
        %p1721 = pneg %p1720
      $region106: #{tpu_custom_call.1} parent=5 // pred_check_branch
        %1723 = sbr.rel (%p1721) target = $region108
      $region107: #{tpu_custom_call.1} parent=5 // pred_region
        %s1724 = ssub.s32 %s30, 2
        // Predicated region
        $region109: #{tpu_custom_call.1} parent=107 // pred_check
          %p1725 = pneg %p363
        $region110: #{tpu_custom_call.1} parent=107 // pred_check_branch
          %1727 = sbr.rel (%p1725) target = $region112
        $region111: #{tpu_custom_call.1} parent=107 // pred_region
          %s1728 = sand.u32 %s348, 1
          %s1729 = scalar_lea.sflag [#allocation5], %s1728
          %s1730 = sand.u32 %s348, 1
          %s1731 = smul.addr %s1730, 8
          %s1732 = scalar_lea.vmem [#allocation15], %s1731
          %1733 = dma.done %s1729, 128
        $region112: #{tpu_custom_call.1} parent=107 // pred_fallthru
          _
      $region108: #{tpu_custom_call.1} parent=5 // pred_fallthru
        _
    $region6: #{tpu_custom_call.1} parent=1 // loop_footer
      %s34 = sadd.s32 1, %s30
    $region7: #{tpu_custom_call.1} parent=1 // loop_footer_branch
      %29 = sbr.rel target = $region3
    $region8: #{tpu_custom_call.1} parent=1 // loop_exit
      _
    %1734 = vsyncpa [#allocation4], 1
    %s1735 = scalar_lea.sflag [#allocation4], 1
    %1736 = vsyncpa %s1735, 1
    %1737 = vsyncpa [#allocation7], 1
    %s1738 = scalar_lea.sflag [#allocation7], 1
    %1739 = vsyncpa %s1738, 1
    %1740 = vsyncpa [#allocation10], 1
    %1741 = vsyncpa [#allocation13], 1
    %1742 = vsyncpa [#allocation5], 1
    %s1743 = scalar_lea.sflag [#allocation5], 1
    %1744 = vsyncpa %s1743, 1

</llo_original>
